<compile_context>
chip_gen: v7x
topology: tpu7x:2x2x1
jax: 0.10.0
libtpu: 0.0.40
codegen_flags: <defaults>
</compile_context>

<pallas_src>
import functools

import jax
import jax.numpy as jnp
from jax import lax
from jax.experimental import pallas as pl
from jax.experimental.pallas import tpu as pltpu  # noqa: F401  (TPU backend)

EPS = 1e-5


def bn_relu_conv_kernel(x_ref, gb_ref, w_ref, o_ref, *, m, eps):
    # x_ref:  (M, Cin)    f32  activations, channels on the lane axis
    # gb_ref: (2, Cin)    f32  row 0 = gamma, row 1 = beta (lane-dense)
    # w_ref:  (Cin, Cout) bf16 conv weight, pre-transposed / pre-cast
    # o_ref:  (M, Cout)   f32  lane-dense output (Cout = 192 >= 128)
    inv_m = 1.0 / float(m)

    # Training-mode batch statistics over N*H*W (sublane axis), biased
    # variance.  Single streamed pass: per-channel sum and sum-of-squares,
    # all per-channel quantities lane-dense (1, Cin).
    x = x_ref[...]
    s = jnp.sum(x, axis=0, keepdims=True)            # (1, Cin)
    ss = jnp.sum(x * x, axis=0, keepdims=True)       # (1, Cin)
    mean = s * inv_m
    var = jnp.maximum(ss * inv_m - mean * mean, 0.0)  # clamp: cancellation guard
    inv_std = lax.rsqrt(var + eps)                    # EUP

    gb = gb_ref[...]
    scale = gb[0:1, :] * inv_std                      # (1, Cin)
    shift = gb[1:2, :] - mean * scale                 # (1, Cin)

    # BN affine + ReLU in f32 on the VPU.  Deliberate re-read of x_ref: the
    # full block exceeds 64 vregs, so the cheap VMEM reload avoids spills.
    y = jnp.maximum(x_ref[...] * scale + shift, 0.0)

    # 1x1 conv == (M, Cin) @ (Cin, Cout) on the MXU; bf16 operands, f32 acc.
    # M = 49 result rows -> few MXU pushes; 192-wide output -> unmasked vst.
    o_ref[...] = jnp.dot(y.astype(jnp.bfloat16), w_ref[...],
                         preferred_element_type=jnp.float32)


def bn_relu_conv1x1(x_nchw, gamma_beta, weight_t):
    """x_nchw: (N, Cin, H, W) f32; gamma_beta: (2, Cin) f32;
    weight_t: (Cin, Cout) bf16 (pre-transposed / pre-cast ONCE outside jit).
    Returns (N, Cout, H, W), matching the PyTorch module's forward."""
    n, cin, h, w = x_nchw.shape
    cout = weight_t.shape[1]
    m = n * h * w

    # NCHW -> (N*H*W, Cin): channels land on the lane axis for the kernel.
    # For this module's shape this is a single small (235 KB) XLA transpose.
    x_t = jnp.transpose(x_nchw, (0, 2, 3, 1)).reshape(m, cin).astype(jnp.float32)

    kernel = functools.partial(bn_relu_conv_kernel, m=m, eps=EPS)

    out2d = pl.pallas_call(
        kernel,
        out_shape=jax.ShapeDtypeStruct((m, cout), jnp.float32),
        grid=(1,),
        in_specs=[
            pl.BlockSpec((m, cin), lambda i: (0, 0)),
            pl.BlockSpec((2, cin), lambda i: (0, 0)),
            pl.BlockSpec((cin, cout), lambda i: (0, 0)),
        ],
        out_specs=pl.BlockSpec((m, cout), lambda i: (0, 0)),
        cost_estimate=pl.CostEstimate(
            flops=2 * m * cin * cout,
            transcendentals=cin,
            bytes_accessed=(m * cin * 4        # x (f32)
                            + 2 * cin * 4      # gamma/beta slab
                            + cin * cout * 2   # weight (bf16)
                            + m * cout * 4)),  # output
    )(x_t, gamma_beta.astype(jnp.float32), weight_t)

    # (N*H*W, Cout) -> (N, Cout, H, W); tiny (37 KB) for this module's shape.
    return jnp.transpose(out2d.reshape(n, h, w, cout), (0, 3, 1, 2))


def _reference(x_nchw, gamma, beta, weight):
    # Pure-JAX reference (training-mode BN + ReLU + 1x1 conv) for validation.
    mean = jnp.mean(x_nchw, axis=(0, 2, 3), keepdims=True)
    var = jnp.mean((x_nchw - mean) ** 2, axis=(0, 2, 3), keepdims=True)
    y = (x_nchw - mean) / jnp.sqrt(var + EPS)
    y = y * gamma[None, :, None, None] + beta[None, :, None, None]
    y = jnp.maximum(y, 0.0)
    return jnp.einsum("nchw,oc->nohw", y, weight)


if __name__ == "__main__":
    # Shapes implied by the module: x419 = randn(1, 1200, 7, 7)
    N, CIN, H, W, COUT = 1, 1200, 7, 7, 192

    key = jax.random.PRNGKey(0)
    kx, kg, kb, kw = jax.random.split(key, 4)
    x = jax.random.normal(kx, (N, CIN, H, W), jnp.float32)
    gamma = 1.0 + 0.1 * jax.random.normal(kg, (CIN,), jnp.float32)
    beta = 0.1 * jax.random.normal(kb, (CIN,), jnp.float32)
    weight = 0.02 * jax.random.normal(kw, (COUT, CIN), jnp.float32)

    # One-time parameter preparation, hoisted out of the per-call path:
    #   * conv weight stored as (Cin, Cout) bf16 (no per-call cast/transpose)
    #   * gamma/beta packed into a single lane-major (2, Cin) slab
    weight_t = jnp.asarray(weight.T, dtype=jnp.bfloat16)   # (Cin, Cout)
    gamma_beta = jnp.stack([gamma, beta], axis=0)           # (2, Cin)
    # TODO(synk): BatchNorm running_mean/running_var (track_running_stats)
    # state updates are not produced by this fused forward kernel.

    fwd = jax.jit(bn_relu_conv1x1)
    out = jax.block_until_ready(fwd(x, gamma_beta, weight_t))

    assert out.shape == (N, COUT, H, W), out.shape
    ref = _reference(x, gamma, beta, weight)
    # bf16 matmul operands (f32 accumulation) -> slightly looser tolerance.
    assert jnp.allclose(out, ref, atol=2e-2, rtol=2e-2)

    print("KERNEL_OK")
</pallas_src>

<mosaic_0001>
module attributes {stable_mosaic.version = 11 : i64} {
  func.func @bn_relu_conv_kernel(%arg0: i32, %arg1: memref<49x1200xf32, #tpu.memory_space<vmem>>, %arg2: memref<2x1200xf32, #tpu.memory_space<vmem>>, %arg3: memref<1200x192xbf16, #tpu.memory_space<vmem>>, %arg4: memref<49x192xf32, #tpu.memory_space<vmem>>) attributes {dimension_semantics = [#tpu.dimension_semantics<arbitrary>], iteration_bounds = array<i64: 1>, scalar_prefetch = 0 : i64, scratch_operands = 0 : i64, tpu.core_type = #tpu.core_type<tc>, window_params = [{pipeline_mode = #tpu.pipeline_mode<synchronous>, transform_indices = @transform_0, window_bounds = array<i64: 49, 1200>}, {pipeline_mode = #tpu.pipeline_mode<synchronous>, transform_indices = @transform_1, window_bounds = array<i64: 2, 1200>}, {pipeline_mode = #tpu.pipeline_mode<synchronous>, transform_indices = @transform_2, window_bounds = array<i64: 1200, 192>}, {pipeline_mode = #tpu.pipeline_mode<synchronous>, transform_indices = @transform_3, window_bounds = array<i64: 49, 192>}]} {
    %c0 = arith.constant 0 : index
    %c0_0 = arith.constant 0 : index
    %0 = vector.load %arg1[%c0, %c0_0] : memref<49x1200xf32, #tpu.memory_space<vmem>>, vector<49x1200xf32>
    %cst = arith.constant dense<0.000000e+00> : vector<1200xf32>
    %1 = vector.multi_reduction <add>, %0, %cst [0] : vector<49x1200xf32> to vector<1200xf32>
    %2 = vector.shape_cast %1 : vector<1200xf32> to vector<1x1200xf32>
    %3 = arith.mulf %0, %0 : vector<49x1200xf32>
    %cst_1 = arith.constant dense<0.000000e+00> : vector<1200xf32>
    %4 = vector.multi_reduction <add>, %3, %cst_1 [0] : vector<49x1200xf32> to vector<1200xf32>
    %5 = vector.shape_cast %4 : vector<1200xf32> to vector<1x1200xf32>
    %cst_2 = arith.constant 0.0204081628 : f32
    %6 = vector.broadcast %cst_2 : f32 to vector<1x1200xf32>
    %7 = arith.mulf %2, %6 : vector<1x1200xf32>
    %cst_3 = arith.constant 0.0204081628 : f32
    %8 = vector.broadcast %cst_3 : f32 to vector<1x1200xf32>
    %9 = arith.mulf %5, %8 : vector<1x1200xf32>
    %10 = arith.mulf %7, %7 : vector<1x1200xf32>
    %11 = arith.subf %9, %10 : vector<1x1200xf32>
    %cst_4 = arith.constant 0.000000e+00 : f32
    %12 = vector.broadcast %cst_4 : f32 to vector<1x1200xf32>
    %13 = arith.maximumf %11, %12 : vector<1x1200xf32>
    %cst_5 = arith.constant 9.99999974E-6 : f32
    %14 = vector.broadcast %cst_5 : f32 to vector<1x1200xf32>
    %15 = arith.addf %13, %14 : vector<1x1200xf32>
    %16 = math.rsqrt %15 : vector<1x1200xf32>
    %c0_6 = arith.constant 0 : index
    %c0_7 = arith.constant 0 : index
    %17 = vector.load %arg2[%c0_6, %c0_7] : memref<2x1200xf32, #tpu.memory_space<vmem>>, vector<2x1200xf32>
    %18 = vector.extract_strided_slice %17 {offsets = [0, 0], sizes = [1, 1200], strides = [1, 1]} : vector<2x1200xf32> to vector<1x1200xf32>
    %19 = arith.mulf %18, %16 : vector<1x1200xf32>
    %20 = vector.extract_strided_slice %17 {offsets = [1, 0], sizes = [1, 1200], strides = [1, 1]} : vector<2x1200xf32> to vector<1x1200xf32>
    %21 = arith.mulf %7, %19 : vector<1x1200xf32>
    %22 = arith.subf %20, %21 : vector<1x1200xf32>
    %c0_8 = arith.constant 0 : index
    %c0_9 = arith.constant 0 : index
    %23 = vector.load %arg1[%c0_8, %c0_9] : memref<49x1200xf32, #tpu.memory_space<vmem>>, vector<49x1200xf32>
    %24 = vector.broadcast %19 : vector<1x1200xf32> to vector<49x1200xf32>
    %25 = arith.mulf %23, %24 : vector<49x1200xf32>
    %26 = vector.broadcast %22 : vector<1x1200xf32> to vector<49x1200xf32>
    %27 = arith.addf %25, %26 : vector<49x1200xf32>
    %cst_10 = arith.constant 0.000000e+00 : f32
    %28 = vector.broadcast %cst_10 : f32 to vector<49x1200xf32>
    %29 = arith.maximumf %27, %28 : vector<49x1200xf32>
    %30 = arith.truncf %29 : vector<49x1200xf32> to vector<49x1200xbf16>
    %c0_11 = arith.constant 0 : index
    %c0_12 = arith.constant 0 : index
    %31 = vector.load %arg3[%c0_11, %c0_12] : memref<1200x192xbf16, #tpu.memory_space<vmem>>, vector<1200x192xbf16>
    %cst_13 = arith.constant dense<0.000000e+00> : vector<49x192xf32>
    %32 = tpu.matmul %30, %31, %cst_13 {dimension_numbers = #tpu.dot_dimension_numbers<[1], [0], [0], [1], [0, 0, 1, 1], [], []>} : vector<49x1200xbf16>, vector<1200x192xbf16>, vector<49x192xf32> -> vector<49x192xf32>
    %c0_14 = arith.constant 0 : index
    %c0_15 = arith.constant 0 : index
    %33 = vector.load %arg4[%c0_14, %c0_15] : memref<49x192xf32, #tpu.memory_space<vmem>>, vector<49x192xf32>
    tpu.vector_store %arg4[%c0_14, %c0_15], %32 {strides = array<i32>} : memref<49x192xf32, #tpu.memory_space<vmem>>, vector<49x192xf32>,
    return
  }
  func.func @transform_0(%arg0: i32) -> (i32, i32) {
    %c0_i32 = arith.constant 0 : i32
    %c0_i32_0 = arith.constant 0 : i32
    %c0_i32_1 = arith.constant 0 : i32
    return %c0_i32, %c0_i32_0 : i32, i32
  }
  func.func @transform_1(%arg0: i32) -> (i32, i32) {
    %c0_i32 = arith.constant 0 : i32
    %c0_i32_0 = arith.constant 0 : i32
    %c0_i32_1 = arith.constant 0 : i32
    return %c0_i32, %c0_i32_0 : i32, i32
  }
  func.func @transform_2(%arg0: i32) -> (i32, i32) {
    %c0_i32 = arith.constant 0 : i32
    %c0_i32_0 = arith.constant 0 : i32
    %c0_i32_1 = arith.constant 0 : i32
    return %c0_i32, %c0_i32_0 : i32, i32
  }
  func.func @transform_3(%arg0: i32) -> (i32, i32) {
    %c0_i32 = arith.constant 0 : i32
    %c0_i32_0 = arith.constant 0 : i32
    %c0_i32_1 = arith.constant 0 : i32
    return %c0_i32, %c0_i32_0 : i32, i32
  }
}

</mosaic_0001>

<llo_original>
// kernel: bn_relu_conv1x1.1
$region0: #{bn_relu_conv1x1.1}
  #allocation0 [shape = 'u32[]', space=smem, size = 0x4, offset = 0x4, fixed_abs, tag = 'smem constant byte address 0x4 - core index']
  #allocation1 [shape = 'u32[144,128]{1,0:T(1,128)}', space=vmem, size = 0x12000, scoped, tag = 'internal scratch']
  %s0 = inlined_call_operand.vmem [shape: f32[49,1200], index: 0, kind: input, shape index: {}]
  %s1 = inlined_call_operand.vmem [shape: f32[2,1200], index: 1, kind: input, shape index: {}]
  %s2 = inlined_call_operand.vmem [shape: bf16[1200,192], index: 2, kind: input, shape index: {}]
  %s3 = inlined_call_operand.vmem [shape: f32[49,192], index: 3, kind: output, shape index: {}]
  %s4 = sld [smem:[#allocation0]]
  $region22: #{bn_relu_conv1x1.1} parent=0
    _
  %s6 = ssub.s32 1, %s4
  %s7 = scalar_select 0, %s6, %s4
  // Predicated region
  $region2: #{bn_relu_conv1x1.1} parent=0 // pred_check
    _
  $region3: #{bn_relu_conv1x1.1} parent=0 // pred_check_branch
    %9 = sbr.rel (0) target = $region5
  $region4: #{bn_relu_conv1x1.1} parent=0 // pred_region
    _
  $region5: #{bn_relu_conv1x1.1} parent=0 // pred_fallthru
    _
  // Predicated region
  $region6: #{bn_relu_conv1x1.1} parent=0 // pred_check
    _
  $region7: #{bn_relu_conv1x1.1} parent=0 // pred_check_branch
    %11 = sbr.rel (0) target = $region9
  $region8: #{bn_relu_conv1x1.1} parent=0 // pred_region
    _
  $region9: #{bn_relu_conv1x1.1} parent=0 // pred_fallthru
    _
  // Predicated region
  $region10: #{bn_relu_conv1x1.1} parent=0 // pred_check
    _
  $region11: #{bn_relu_conv1x1.1} parent=0 // pred_check_branch
    %13 = sbr.rel (0) target = $region13
  $region12: #{bn_relu_conv1x1.1} parent=0 // pred_region
    _
  $region13: #{bn_relu_conv1x1.1} parent=0 // pred_fallthru
    _
  %v15 = vld [vmem:[%s0] sm:$0xff]
  %v16 = vld [vmem:[%s0 + $0x8] sm:$0xff]
  %v17 = vld [vmem:[%s0 + $0x10] sm:$0xff]
  %v18 = vld [vmem:[%s0 + $0x18] sm:$0xff]
  %v19 = vld [vmem:[%s0 + $0x20] sm:$0xff]
  %v20 = vld [vmem:[%s0 + $0x28] sm:$0xff]
  %v21 = vld [vmem:[%s0 + $0x30] sm:$0xff]
  %v22 = vld [vmem:[%s0 + $0x38] sm:$0xff]
  %v23 = vld [vmem:[%s0 + $0x40] sm:$0xff]
  %v24 = vld [vmem:[%s0 + $0x48] sm:$0xff]
  %v25 = vld [vmem:[%s0 + $0x50] sm:$0xff]
  %v26 = vld [vmem:[%s0 + $0x58] sm:$0xff]
  %v27 = vld [vmem:[%s0 + $0x60] sm:$0xff]
  %v28 = vld [vmem:[%s0 + $0x68] sm:$0xff]
  %v29 = vld [vmem:[%s0 + $0x70] sm:$0xff]
  %v30 = vld [vmem:[%s0 + $0x78] sm:$0xff]
  %v31 = vld [vmem:[%s0 + $0x80] sm:$0xff]
  %v32 = vld [vmem:[%s0 + $0x88] sm:$0xff]
  %v33 = vld [vmem:[%s0 + $0x90] sm:$0xff]
  %v34 = vld [vmem:[%s0 + $0x98] sm:$0xff]
  %v35 = vld [vmem:[%s0 + $0xa0] sm:$0xff]
  %v36 = vld [vmem:[%s0 + $0xa8] sm:$0xff]
  %v37 = vld [vmem:[%s0 + $0xb0] sm:$0xff]
  %v38 = vld [vmem:[%s0 + $0xb8] sm:$0xff]
  %v39 = vld [vmem:[%s0 + $0xc0] sm:$0xff]
  %v40 = vld [vmem:[%s0 + $0xc8] sm:$0xff]
  %v41 = vld [vmem:[%s0 + $0xd0] sm:$0xff]
  %v42 = vld [vmem:[%s0 + $0xd8] sm:$0xff]
  %v43 = vld [vmem:[%s0 + $0xe0] sm:$0xff]
  %v44 = vld [vmem:[%s0 + $0xe8] sm:$0xff]
  %v45 = vld [vmem:[%s0 + $0xf0] sm:$0xff]
  %v46 = vld [vmem:[%s0 + $0xf8] sm:$0xff]
  %v47 = vld [vmem:[%s0 + $0x100] sm:$0xff]
  %v48 = vld [vmem:[%s0 + $0x108] sm:$0xff]
  %v49 = vld [vmem:[%s0 + $0x110] sm:$0xff]
  %v50 = vld [vmem:[%s0 + $0x118] sm:$0xff]
  %v51 = vld [vmem:[%s0 + $0x120] sm:$0xff]
  %v52 = vld [vmem:[%s0 + $0x128] sm:$0xff]
  %v53 = vld [vmem:[%s0 + $0x130] sm:$0xff]
  %v54 = vld [vmem:[%s0 + $0x138] sm:$0xff]
  %v55 = vld [vmem:[%s0 + $0x140] sm:$0xff]
  %v56 = vld [vmem:[%s0 + $0x148] sm:$0xff]
  %v57 = vld [vmem:[%s0 + $0x150] sm:$0xff]
  %v58 = vld [vmem:[%s0 + $0x158] sm:$0xff]
  %v59 = vld [vmem:[%s0 + $0x160] sm:$0xff]
  %v60 = vld [vmem:[%s0 + $0x168] sm:$0xff]
  %v61 = vld [vmem:[%s0 + $0x170] sm:$0xff]
  %v62 = vld [vmem:[%s0 + $0x178] sm:$0xff]
  %v63 = vld [vmem:[%s0 + $0x180] sm:$0xff]
  %v64 = vld [vmem:[%s0 + $0x188] sm:$0xff]
  %v65 = vld [vmem:[%s0 + $0x190] sm:$0xff]
  %v66 = vld [vmem:[%s0 + $0x198] sm:$0xff]
  %v67 = vld [vmem:[%s0 + $0x1a0] sm:$0xff]
  %v68 = vld [vmem:[%s0 + $0x1a8] sm:$0xff]
  %v69 = vld [vmem:[%s0 + $0x1b0] sm:$0xff]
  %v70 = vld [vmem:[%s0 + $0x1b8] sm:$0xff]
  %v71 = vld [vmem:[%s0 + $0x1c0] sm:$0xff]
  %v72 = vld [vmem:[%s0 + $0x1c8] sm:$0xff]
  %v73 = vld [vmem:[%s0 + $0x1d0] sm:$0xff]
  %v74 = vld [vmem:[%s0 + $0x1d8] sm:$0xff]
  %v75 = vld [vmem:[%s0 + $0x1e0] sm:$0x1]
  %v76 = vld [vmem:[%s0 + $0x1e8] sm:$0x1]
  %v77 = vld [vmem:[%s0 + $0x1f0] sm:$0x1]
  %v78 = vld [vmem:[%s0 + $0x1f8] sm:$0x1]
  %v79 = vld [vmem:[%s0 + $0x200] sm:$0x1]
  %v80 = vld [vmem:[%s0 + $0x208] sm:$0x1]
  %v81 = vld [vmem:[%s0 + $0x210] sm:$0x1]
  %v82 = vld [vmem:[%s0 + $0x218] sm:$0x1]
  %v83 = vld [vmem:[%s0 + $0x220] sm:$0x1]
  %v84 = vld [vmem:[%s0 + $0x228] sm:$0x1]
  %v85 = vadd.f32 %v15, %v25
  %v86 = vadd.f32 %v85, %v35
  %v87 = vadd.f32 %v86, %v45
  %v88 = vadd.f32 %v87, %v55
  %v89 = vadd.f32 %v88, %v65
  %vm90 = vcmask 1040384
  %v91 = vsel %vm90, %v75, 0.0
  %v92 = vadd.f32 %v89, %v91
  %v93 = vrot.slane %v92, 4
  %v94 = vadd.f32 %v92, %v93
  %v95 = vrot.slane %v94, 2
  %v96 = vadd.f32 %v94, %v95
  %v97 = vrot.slane %v96, 1
  %v98 = vadd.f32 %v96, %v97
  %v99 = vadd.f32 %v16, %v26
  %v100 = vadd.f32 %v99, %v36
  %v101 = vadd.f32 %v100, %v46
  %v102 = vadd.f32 %v101, %v56
  %v103 = vadd.f32 %v102, %v66
  %v104 = vsel %vm90, %v76, 0.0
  %v105 = vadd.f32 %v103, %v104
  %v106 = vrot.slane %v105, 4
  %v107 = vadd.f32 %v105, %v106
  %v108 = vrot.slane %v107, 2
  %v109 = vadd.f32 %v107, %v108
  %v110 = vrot.slane %v109, 1
  %v111 = vadd.f32 %v109, %v110
  %v112 = vadd.f32 %v17, %v27
  %v113 = vadd.f32 %v112, %v37
  %v114 = vadd.f32 %v113, %v47
  %v115 = vadd.f32 %v114, %v57
  %v116 = vadd.f32 %v115, %v67
  %v117 = vsel %vm90, %v77, 0.0
  %v118 = vadd.f32 %v116, %v117
  %v119 = vrot.slane %v118, 4
  %v120 = vadd.f32 %v118, %v119
  %v121 = vrot.slane %v120, 2
  %v122 = vadd.f32 %v120, %v121
  %v123 = vrot.slane %v122, 1
  %v124 = vadd.f32 %v122, %v123
  %v125 = vadd.f32 %v18, %v28
  %v126 = vadd.f32 %v125, %v38
  %v127 = vadd.f32 %v126, %v48
  %v128 = vadd.f32 %v127, %v58
  %v129 = vadd.f32 %v128, %v68
  %v130 = vsel %vm90, %v78, 0.0
  %v131 = vadd.f32 %v129, %v130
  %v132 = vrot.slane %v131, 4
  %v133 = vadd.f32 %v131, %v132
  %v134 = vrot.slane %v133, 2
  %v135 = vadd.f32 %v133, %v134
  %v136 = vrot.slane %v135, 1
  %v137 = vadd.f32 %v135, %v136
  %v138 = vadd.f32 %v19, %v29
  %v139 = vadd.f32 %v138, %v39
  %v140 = vadd.f32 %v139, %v49
  %v141 = vadd.f32 %v140, %v59
  %v142 = vadd.f32 %v141, %v69
  %v143 = vsel %vm90, %v79, 0.0
  %v144 = vadd.f32 %v142, %v143
  %v145 = vrot.slane %v144, 4
  %v146 = vadd.f32 %v144, %v145
  %v147 = vrot.slane %v146, 2
  %v148 = vadd.f32 %v146, %v147
  %v149 = vrot.slane %v148, 1
  %v150 = vadd.f32 %v148, %v149
  %v151 = vadd.f32 %v20, %v30
  %v152 = vadd.f32 %v151, %v40
  %v153 = vadd.f32 %v152, %v50
  %v154 = vadd.f32 %v153, %v60
  %v155 = vadd.f32 %v154, %v70
  %v156 = vsel %vm90, %v80, 0.0
  %v157 = vadd.f32 %v155, %v156
  %v158 = vrot.slane %v157, 4
  %v159 = vadd.f32 %v157, %v158
  %v160 = vrot.slane %v159, 2
  %v161 = vadd.f32 %v159, %v160
  %v162 = vrot.slane %v161, 1
  %v163 = vadd.f32 %v161, %v162
  %v164 = vadd.f32 %v21, %v31
  %v165 = vadd.f32 %v164, %v41
  %v166 = vadd.f32 %v165, %v51
  %v167 = vadd.f32 %v166, %v61
  %v168 = vadd.f32 %v167, %v71
  %v169 = vsel %vm90, %v81, 0.0
  %v170 = vadd.f32 %v168, %v169
  %v171 = vrot.slane %v170, 4
  %v172 = vadd.f32 %v170, %v171
  %v173 = vrot.slane %v172, 2
  %v174 = vadd.f32 %v172, %v173
  %v175 = vrot.slane %v174, 1
  %v176 = vadd.f32 %v174, %v175
  %v177 = vadd.f32 %v22, %v32
  %v178 = vadd.f32 %v177, %v42
  %v179 = vadd.f32 %v178, %v52
  %v180 = vadd.f32 %v179, %v62
  %v181 = vadd.f32 %v180, %v72
  %v182 = vsel %vm90, %v82, 0.0
  %v183 = vadd.f32 %v181, %v182
  %v184 = vrot.slane %v183, 4
  %v185 = vadd.f32 %v183, %v184
  %v186 = vrot.slane %v185, 2
  %v187 = vadd.f32 %v185, %v186
  %v188 = vrot.slane %v187, 1
  %v189 = vadd.f32 %v187, %v188
  %v190 = vadd.f32 %v23, %v33
  %v191 = vadd.f32 %v190, %v43
  %v192 = vadd.f32 %v191, %v53
  %v193 = vadd.f32 %v192, %v63
  %v194 = vadd.f32 %v193, %v73
  %v195 = vsel %vm90, %v83, 0.0
  %v196 = vadd.f32 %v194, %v195
  %v197 = vrot.slane %v196, 4
  %v198 = vadd.f32 %v196, %v197
  %v199 = vrot.slane %v198, 2
  %v200 = vadd.f32 %v198, %v199
  %v201 = vrot.slane %v200, 1
  %v202 = vadd.f32 %v200, %v201
  %vm203 = vcmask 392192
  %v204 = vsel %vm203, %v24, 0.0
  %v205 = vsel %vm203, %v34, 0.0
  %v206 = vadd.f32 %v204, %v205
  %v207 = vsel %vm203, %v44, 0.0
  %v208 = vadd.f32 %v206, %v207
  %v209 = vsel %vm203, %v54, 0.0
  %v210 = vadd.f32 %v208, %v209
  %v211 = vsel %vm203, %v64, 0.0
  %v212 = vadd.f32 %v210, %v211
  %v213 = vsel %vm203, %v74, 0.0
  %v214 = vadd.f32 %v212, %v213
  %vm215 = vcmask 385024
  %v216 = vsel %vm215, %v84, 0.0
  %v217 = vadd.f32 %v214, %v216
  %v218 = vrot.slane %v217, 4
  %v219 = vadd.f32 %v217, %v218
  %v220 = vrot.slane %v219, 2
  %v221 = vadd.f32 %v219, %v220
  %v222 = vrot.slane %v221, 1
  %v223 = vadd.f32 %v221, %v222
  %v224 = vmul.f32 %v15, %v15
  %v225 = vmul.f32 %v16, %v16
  %v226 = vmul.f32 %v17, %v17
  %v227 = vmul.f32 %v18, %v18
  %v228 = vmul.f32 %v19, %v19
  %v229 = vmul.f32 %v20, %v20
  %v230 = vmul.f32 %v21, %v21
  %v231 = vmul.f32 %v22, %v22
  %v232 = vmul.f32 %v23, %v23
  %v233 = vmul.f32 %v24, %v24
  %v234 = vmul.f32 %v25, %v25
  %v235 = vmul.f32 %v26, %v26
  %v236 = vmul.f32 %v27, %v27
  %v237 = vmul.f32 %v28, %v28
  %v238 = vmul.f32 %v29, %v29
  %v239 = vmul.f32 %v30, %v30
  %v240 = vmul.f32 %v31, %v31
  %v241 = vmul.f32 %v32, %v32
  %v242 = vmul.f32 %v33, %v33
  %v243 = vmul.f32 %v34, %v34
  %v244 = vmul.f32 %v35, %v35
  %v245 = vmul.f32 %v36, %v36
  %v246 = vmul.f32 %v37, %v37
  %v247 = vmul.f32 %v38, %v38
  %v248 = vmul.f32 %v39, %v39
  %v249 = vmul.f32 %v40, %v40
  %v250 = vmul.f32 %v41, %v41
  %v251 = vmul.f32 %v42, %v42
  %v252 = vmul.f32 %v43, %v43
  %v253 = vmul.f32 %v44, %v44
  %v254 = vmul.f32 %v45, %v45
  %v255 = vmul.f32 %v46, %v46
  %v256 = vmul.f32 %v47, %v47
  %v257 = vmul.f32 %v48, %v48
  %v258 = vmul.f32 %v49, %v49
  %v259 = vmul.f32 %v50, %v50
  %v260 = vmul.f32 %v51, %v51
  %v261 = vmul.f32 %v52, %v52
  %v262 = vmul.f32 %v53, %v53
  %v263 = vmul.f32 %v54, %v54
  %v264 = vmul.f32 %v55, %v55
  %v265 = vmul.f32 %v56, %v56
  %v266 = vmul.f32 %v57, %v57
  %v267 = vmul.f32 %v58, %v58
  %v268 = vmul.f32 %v59, %v59
  %v269 = vmul.f32 %v60, %v60
  %v270 = vmul.f32 %v61, %v61
  %v271 = vmul.f32 %v62, %v62
  %v272 = vmul.f32 %v63, %v63
  %v273 = vmul.f32 %v64, %v64
  %v274 = vmul.f32 %v65, %v65
  %v275 = vmul.f32 %v66, %v66
  %v276 = vmul.f32 %v67, %v67
  %v277 = vmul.f32 %v68, %v68
  %v278 = vmul.f32 %v69, %v69
  %v279 = vmul.f32 %v70, %v70
  %v280 = vmul.f32 %v71, %v71
  %v281 = vmul.f32 %v72, %v72
  %v282 = vmul.f32 %v73, %v73
  %v283 = vmul.f32 %v74, %v74
  %v284 = vmul.f32 %v75, %v75
  %v285 = vmul.f32 %v76, %v76
  %v286 = vmul.f32 %v77, %v77
  %v287 = vmul.f32 %v78, %v78
  %v288 = vmul.f32 %v79, %v79
  %v289 = vmul.f32 %v80, %v80
  %v290 = vmul.f32 %v81, %v81
  %v291 = vmul.f32 %v82, %v82
  %v292 = vmul.f32 %v83, %v83
  %v293 = vmul.f32 %v84, %v84
  %v294 = vadd.f32 %v224, %v234
  %v295 = vadd.f32 %v294, %v244
  %v296 = vadd.f32 %v295, %v254
  %v297 = vadd.f32 %v296, %v264
  %v298 = vadd.f32 %v297, %v274
  %v299 = vsel %vm90, %v284, 0.0
  %v300 = vadd.f32 %v298, %v299
  %v301 = vrot.slane %v300, 4
  %v302 = vadd.f32 %v300, %v301
  %v303 = vrot.slane %v302, 2
  %v304 = vadd.f32 %v302, %v303
  %v305 = vrot.slane %v304, 1
  %v306 = vadd.f32 %v304, %v305
  %v307 = vadd.f32 %v225, %v235
  %v308 = vadd.f32 %v307, %v245
  %v309 = vadd.f32 %v308, %v255
  %v310 = vadd.f32 %v309, %v265
  %v311 = vadd.f32 %v310, %v275
  %v312 = vsel %vm90, %v285, 0.0
  %v313 = vadd.f32 %v311, %v312
  %v314 = vrot.slane %v313, 4
  %v315 = vadd.f32 %v313, %v314
  %v316 = vrot.slane %v315, 2
  %v317 = vadd.f32 %v315, %v316
  %v318 = vrot.slane %v317, 1
  %v319 = vadd.f32 %v317, %v318
  %v320 = vadd.f32 %v226, %v236
  %v321 = vadd.f32 %v320, %v246
  %v322 = vadd.f32 %v321, %v256
  %v323 = vadd.f32 %v322, %v266
  %v324 = vadd.f32 %v323, %v276
  %v325 = vsel %vm90, %v286, 0.0
  %v326 = vadd.f32 %v324, %v325
  %v327 = vrot.slane %v326, 4
  %v328 = vadd.f32 %v326, %v327
  %v329 = vrot.slane %v328, 2
  %v330 = vadd.f32 %v328, %v329
  %v331 = vrot.slane %v330, 1
  %v332 = vadd.f32 %v330, %v331
  %v333 = vadd.f32 %v227, %v237
  %v334 = vadd.f32 %v333, %v247
  %v335 = vadd.f32 %v334, %v257
  %v336 = vadd.f32 %v335, %v267
  %v337 = vadd.f32 %v336, %v277
  %v338 = vsel %vm90, %v287, 0.0
  %v339 = vadd.f32 %v337, %v338
  %v340 = vrot.slane %v339, 4
  %v341 = vadd.f32 %v339, %v340
  %v342 = vrot.slane %v341, 2
  %v343 = vadd.f32 %v341, %v342
  %v344 = vrot.slane %v343, 1
  %v345 = vadd.f32 %v343, %v344
  %v346 = vadd.f32 %v228, %v238
  %v347 = vadd.f32 %v346, %v248
  %v348 = vadd.f32 %v347, %v258
  %v349 = vadd.f32 %v348, %v268
  %v350 = vadd.f32 %v349, %v278
  %v351 = vsel %vm90, %v288, 0.0
  %v352 = vadd.f32 %v350, %v351
  %v353 = vrot.slane %v352, 4
  %v354 = vadd.f32 %v352, %v353
  %v355 = vrot.slane %v354, 2
  %v356 = vadd.f32 %v354, %v355
  %v357 = vrot.slane %v356, 1
  %v358 = vadd.f32 %v356, %v357
  %v359 = vadd.f32 %v229, %v239
  %v360 = vadd.f32 %v359, %v249
  %v361 = vadd.f32 %v360, %v259
  %v362 = vadd.f32 %v361, %v269
  %v363 = vadd.f32 %v362, %v279
  %v364 = vsel %vm90, %v289, 0.0
  %v365 = vadd.f32 %v363, %v364
  %v366 = vrot.slane %v365, 4
  %v367 = vadd.f32 %v365, %v366
  %v368 = vrot.slane %v367, 2
  %v369 = vadd.f32 %v367, %v368
  %v370 = vrot.slane %v369, 1
  %v371 = vadd.f32 %v369, %v370
  %v372 = vadd.f32 %v230, %v240
  %v373 = vadd.f32 %v372, %v250
  %v374 = vadd.f32 %v373, %v260
  %v375 = vadd.f32 %v374, %v270
  %v376 = vadd.f32 %v375, %v280
  %v377 = vsel %vm90, %v290, 0.0
  %v378 = vadd.f32 %v376, %v377
  %v379 = vrot.slane %v378, 4
  %v380 = vadd.f32 %v378, %v379
  %v381 = vrot.slane %v380, 2
  %v382 = vadd.f32 %v380, %v381
  %v383 = vrot.slane %v382, 1
  %v384 = vadd.f32 %v382, %v383
  %v385 = vadd.f32 %v231, %v241
  %v386 = vadd.f32 %v385, %v251
  %v387 = vadd.f32 %v386, %v261
  %v388 = vadd.f32 %v387, %v271
  %v389 = vadd.f32 %v388, %v281
  %v390 = vsel %vm90, %v291, 0.0
  %v391 = vadd.f32 %v389, %v390
  %v392 = vrot.slane %v391, 4
  %v393 = vadd.f32 %v391, %v392
  %v394 = vrot.slane %v393, 2
  %v395 = vadd.f32 %v393, %v394
  %v396 = vrot.slane %v395, 1
  %v397 = vadd.f32 %v395, %v396
  %v398 = vadd.f32 %v232, %v242
  %v399 = vadd.f32 %v398, %v252
  %v400 = vadd.f32 %v399, %v262
  %v401 = vadd.f32 %v400, %v272
  %v402 = vadd.f32 %v401, %v282
  %v403 = vsel %vm90, %v292, 0.0
  %v404 = vadd.f32 %v402, %v403
  %v405 = vrot.slane %v404, 4
  %v406 = vadd.f32 %v404, %v405
  %v407 = vrot.slane %v406, 2
  %v408 = vadd.f32 %v406, %v407
  %v409 = vrot.slane %v408, 1
  %v410 = vadd.f32 %v408, %v409
  %v411 = vsel %vm203, %v233, 0.0
  %v412 = vsel %vm203, %v243, 0.0
  %v413 = vadd.f32 %v411, %v412
  %v414 = vsel %vm203, %v253, 0.0
  %v415 = vadd.f32 %v413, %v414
  %v416 = vsel %vm203, %v263, 0.0
  %v417 = vadd.f32 %v415, %v416
  %v418 = vsel %vm203, %v273, 0.0
  %v419 = vadd.f32 %v417, %v418
  %v420 = vsel %vm203, %v283, 0.0
  %v421 = vadd.f32 %v419, %v420
  %v422 = vsel %vm215, %v293, 0.0
  %v423 = vadd.f32 %v421, %v422
  %v424 = vrot.slane %v423, 4
  %v425 = vadd.f32 %v423, %v424
  %v426 = vrot.slane %v425, 2
  %v427 = vadd.f32 %v425, %v426
  %v428 = vrot.slane %v427, 1
  %v429 = vadd.f32 %v427, %v428
  %v430 = vmul.f32 %v98, 0.020408163
  %v431 = vmul.f32 %v111, 0.020408163
  %v432 = vmul.f32 %v124, 0.020408163
  %v433 = vmul.f32 %v137, 0.020408163
  %v434 = vmul.f32 %v150, 0.020408163
  %v435 = vmul.f32 %v163, 0.020408163
  %v436 = vmul.f32 %v176, 0.020408163
  %v437 = vmul.f32 %v189, 0.020408163
  %v438 = vmul.f32 %v202, 0.020408163
  %v439 = vmul.f32 %v223, 0.020408163
  %v440 = vmul.f32 %v306, 0.020408163
  %v441 = vmul.f32 %v319, 0.020408163
  %v442 = vmul.f32 %v332, 0.020408163
  %v443 = vmul.f32 %v345, 0.020408163
  %v444 = vmul.f32 %v358, 0.020408163
  %v445 = vmul.f32 %v371, 0.020408163
  %v446 = vmul.f32 %v384, 0.020408163
  %v447 = vmul.f32 %v397, 0.020408163
  %v448 = vmul.f32 %v410, 0.020408163
  %v449 = vmul.f32 %v429, 0.020408163
  %v450 = vmul.f32 %v430, %v430
  %v451 = vmul.f32 %v431, %v431
  %v452 = vmul.f32 %v432, %v432
  %v453 = vmul.f32 %v433, %v433
  %v454 = vmul.f32 %v434, %v434
  %v455 = vmul.f32 %v435, %v435
  %v456 = vmul.f32 %v436, %v436
  %v457 = vmul.f32 %v437, %v437
  %v458 = vmul.f32 %v438, %v438
  %v459 = vmul.f32 %v439, %v439
  %v460 = vsub.f32 %v440, %v450
  %v461 = vsub.f32 %v441, %v451
  %v462 = vsub.f32 %v442, %v452
  %v463 = vsub.f32 %v443, %v453
  %v464 = vsub.f32 %v444, %v454
  %v465 = vsub.f32 %v445, %v455
  %v466 = vsub.f32 %v446, %v456
  %v467 = vsub.f32 %v447, %v457
  %v468 = vsub.f32 %v448, %v458
  %v469 = vsub.f32 %v449, %v459
  %v470 = vmax.f32 %v460, 0.0
  %v471 = vmax.f32 %v461, 0.0
  %v472 = vmax.f32 %v462, 0.0
  %v473 = vmax.f32 %v463, 0.0
  %v474 = vmax.f32 %v464, 0.0
  %v475 = vmax.f32 %v465, 0.0
  %v476 = vmax.f32 %v466, 0.0
  %v477 = vmax.f32 %v467, 0.0
  %v478 = vmax.f32 %v468, 0.0
  %v479 = vmax.f32 %v469, 0.0
  %v480 = vadd.f32 %v470, 1e-05
  %v481 = vadd.f32 %v471, 1e-05
  %v482 = vadd.f32 %v472, 1e-05
  %v483 = vadd.f32 %v473, 1e-05
  %v484 = vadd.f32 %v474, 1e-05
  %v485 = vadd.f32 %v475, 1e-05
  %v486 = vadd.f32 %v476, 1e-05
  %v487 = vadd.f32 %v477, 1e-05
  %v488 = vadd.f32 %v478, 1e-05
  %v489 = vadd.f32 %v479, 1e-05
  %v490 = vrsqrt.pop %v480
  %v491 = vrsqrt.pop %v481
  %v492 = vrsqrt.pop %v482
  %v493 = vrsqrt.pop %v483
  %v494 = vrsqrt.pop %v484
  %v495 = vrsqrt.pop %v485
  %v496 = vrsqrt.pop %v486
  %v497 = vrsqrt.pop %v487
  %v498 = vrsqrt.pop %v488
  %v499 = vrsqrt.pop %v489
  %v500 = vld [vmem:[%s1] sm:$0xff]
  %v501 = vld [vmem:[%s1 + $0x8] sm:$0xff]
  %v502 = vld [vmem:[%s1 + $0x10] sm:$0xf]
  %v513 = vcombine.low %v490, %v491
  %v514 = vcombine.low %v492, %v493
  %v516 = vunpack.c.l.s4 1983009808
  %v517 = vunpack.c.0.s8 %v516
  %v518 = vlaneseq
  %v519 = vshrl.u32 %v518, 7
  %v520 = vsub.s32 %v517, %v519
  %v521 = vrot.slane %v513, %v520
  %v523 = vunpack.c.l.s4 1983009808
  %v524 = vunpack.c.0.s8 %v523
  %v525 = vlaneseq
  %v526 = vshrl.u32 %v525, 7
  %v527 = vsub.s32 %v524, %v526
  %v528 = vrot.slane %v514, %v527
  %v529 = vcombine.low %v521, %v528
  %v530 = vcombine.low %v494, %v495
  %v531 = vcombine.low %v496, %v497
  %v533 = vunpack.c.l.s4 1983009808
  %v534 = vunpack.c.0.s8 %v533
  %v535 = vlaneseq
  %v536 = vshrl.u32 %v535, 7
  %v537 = vsub.s32 %v534, %v536
  %v538 = vrot.slane %v530, %v537
  %v540 = vunpack.c.l.s4 1983009808
  %v541 = vunpack.c.0.s8 %v540
  %v542 = vlaneseq
  %v543 = vshrl.u32 %v542, 7
  %v544 = vsub.s32 %v541, %v543
  %v545 = vrot.slane %v531, %v544
  %v546 = vcombine.low %v538, %v545
  %v547 = vcombine.low %v498, %v499
  %v549 = vunpack.c.l.s4 1983009808
  %v550 = vunpack.c.0.s8 %v549
  %v551 = vlaneseq
  %v552 = vshrl.u32 %v551, 7
  %v553 = vsub.s32 %v550, %v552
  %v554 = vrot.slane %v547, %v553
  %v558 = vmul.f32 %v500, %v529
  %v559 = vmul.f32 %v501, %v546
  %v560 = vmul.f32 %v502, %v554
  %v564 = vlaneseq
  %v565 = vshrl.u32 %v564, 7
  %v566 = vsub.s32 0, %v565
  %v567 = vrot.slane %v558, %v566
  %v568 = vlaneseq
  %v569 = vshrl.u32 %v568, 7
  %v570 = vsub.s32 2, %v569
  %v571 = vrot.slane %v558, %v570
  %v572 = vlaneseq
  %v573 = vshrl.u32 %v572, 7
  %v574 = vsub.s32 4, %v573
  %v575 = vrot.slane %v558, %v574
  %v576 = vlaneseq
  %v577 = vshrl.u32 %v576, 7
  %v578 = vsub.s32 6, %v577
  %v579 = vrot.slane %v558, %v578
  %v580 = vlaneseq
  %v581 = vshrl.u32 %v580, 7
  %v582 = vsub.s32 0, %v581
  %v583 = vrot.slane %v559, %v582
  %v584 = vlaneseq
  %v585 = vshrl.u32 %v584, 7
  %v586 = vsub.s32 2, %v585
  %v587 = vrot.slane %v559, %v586
  %v588 = vlaneseq
  %v589 = vshrl.u32 %v588, 7
  %v590 = vsub.s32 4, %v589
  %v591 = vrot.slane %v559, %v590
  %v592 = vlaneseq
  %v593 = vshrl.u32 %v592, 7
  %v594 = vsub.s32 6, %v593
  %v595 = vrot.slane %v559, %v594
  %v596 = vlaneseq
  %v597 = vshrl.u32 %v596, 7
  %v598 = vsub.s32 0, %v597
  %v599 = vrot.slane %v560, %v598
  %v600 = vlaneseq
  %v601 = vshrl.u32 %v600, 7
  %v602 = vsub.s32 2, %v601
  %v603 = vrot.slane %v560, %v602
  %v614 = vmul.f32 %v430, %v567
  %v615 = vmul.f32 %v431, %v571
  %v616 = vmul.f32 %v432, %v575
  %v617 = vmul.f32 %v433, %v579
  %v618 = vmul.f32 %v434, %v583
  %v619 = vmul.f32 %v435, %v587
  %v620 = vmul.f32 %v436, %v591
  %v621 = vmul.f32 %v437, %v595
  %v622 = vmul.f32 %v438, %v599
  %v623 = vmul.f32 %v439, %v603
  %v634 = vcombine.low %v614, %v615
  %v635 = vcombine.low %v616, %v617
  %v637 = vunpack.c.l.s4 1983009808
  %v638 = vunpack.c.0.s8 %v637
  %v639 = vlaneseq
  %v640 = vshrl.u32 %v639, 7
  %v641 = vsub.s32 %v638, %v640
  %v642 = vrot.slane %v634, %v641
  %v644 = vunpack.c.l.s4 1983009808
  %v645 = vunpack.c.0.s8 %v644
  %v646 = vlaneseq
  %v647 = vshrl.u32 %v646, 7
  %v648 = vsub.s32 %v645, %v647
  %v649 = vrot.slane %v635, %v648
  %v650 = vcombine.low %v642, %v649
  %v651 = vcombine.low %v618, %v619
  %v652 = vcombine.low %v620, %v621
  %v654 = vunpack.c.l.s4 1983009808
  %v655 = vunpack.c.0.s8 %v654
  %v656 = vlaneseq
  %v657 = vshrl.u32 %v656, 7
  %v658 = vsub.s32 %v655, %v657
  %v659 = vrot.slane %v651, %v658
  %v661 = vunpack.c.l.s4 1983009808
  %v662 = vunpack.c.0.s8 %v661
  %v663 = vlaneseq
  %v664 = vshrl.u32 %v663, 7
  %v665 = vsub.s32 %v662, %v664
  %v666 = vrot.slane %v652, %v665
  %v667 = vcombine.low %v659, %v666
  %v668 = vcombine.low %v622, %v623
  %v670 = vunpack.c.l.s4 1983009808
  %v671 = vunpack.c.0.s8 %v670
  %v672 = vlaneseq
  %v673 = vshrl.u32 %v672, 7
  %v674 = vsub.s32 %v671, %v673
  %v675 = vrot.slane %v668, %v674
  %v676 = vrot.slane %v650, 7
  %v677 = vrot.slane %v667, 7
  %v678 = vrot.slane %v675, 7
  %v682 = vsub.f32 %v500, %v676
  %v683 = vsub.f32 %v501, %v677
  %v684 = vsub.f32 %v502, %v678
  %v685 = vlaneseq
  %v686 = vshrl.u32 %v685, 7
  %v687 = vsub.s32 0, %v686
  %v688 = vrot.slane %v567, %v687
  %v689 = vlaneseq
  %v690 = vshrl.u32 %v689, 7
  %v691 = vsub.s32 0, %v690
  %v692 = vrot.slane %v571, %v691
  %v693 = vlaneseq
  %v694 = vshrl.u32 %v693, 7
  %v695 = vsub.s32 0, %v694
  %v696 = vrot.slane %v575, %v695
  %v697 = vlaneseq
  %v698 = vshrl.u32 %v697, 7
  %v699 = vsub.s32 0, %v698
  %v700 = vrot.slane %v579, %v699
  %v701 = vlaneseq
  %v702 = vshrl.u32 %v701, 7
  %v703 = vsub.s32 0, %v702
  %v704 = vrot.slane %v583, %v703
  %v705 = vlaneseq
  %v706 = vshrl.u32 %v705, 7
  %v707 = vsub.s32 0, %v706
  %v708 = vrot.slane %v587, %v707
  %v709 = vlaneseq
  %v710 = vshrl.u32 %v709, 7
  %v711 = vsub.s32 0, %v710
  %v712 = vrot.slane %v591, %v711
  %v713 = vlaneseq
  %v714 = vshrl.u32 %v713, 7
  %v715 = vsub.s32 0, %v714
  %v716 = vrot.slane %v595, %v715
  %v717 = vlaneseq
  %v718 = vshrl.u32 %v717, 7
  %v719 = vsub.s32 0, %v718
  %v720 = vrot.slane %v599, %v719
  %v721 = vlaneseq
  %v722 = vshrl.u32 %v721, 7
  %v723 = vsub.s32 0, %v722
  %v724 = vrot.slane %v603, %v723
  %v725 = vmul.f32 %v15, %v688
  %v726 = vmul.f32 %v16, %v692
  %v727 = vmul.f32 %v17, %v696
  %v728 = vmul.f32 %v18, %v700
  %v729 = vmul.f32 %v19, %v704
  %v730 = vmul.f32 %v20, %v708
  %v731 = vmul.f32 %v21, %v712
  %v732 = vmul.f32 %v22, %v716
  %v733 = vmul.f32 %v23, %v720
  %v734 = vmul.f32 %v24, %v724
  %v735 = vmul.f32 %v25, %v688
  %v736 = vmul.f32 %v26, %v692
  %v737 = vmul.f32 %v27, %v696
  %v738 = vmul.f32 %v28, %v700
  %v739 = vmul.f32 %v29, %v704
  %v740 = vmul.f32 %v30, %v708
  %v741 = vmul.f32 %v31, %v712
  %v742 = vmul.f32 %v32, %v716
  %v743 = vmul.f32 %v33, %v720
  %v744 = vmul.f32 %v34, %v724
  %v745 = vmul.f32 %v35, %v688
  %v746 = vmul.f32 %v36, %v692
  %v747 = vmul.f32 %v37, %v696
  %v748 = vmul.f32 %v38, %v700
  %v749 = vmul.f32 %v39, %v704
  %v750 = vmul.f32 %v40, %v708
  %v751 = vmul.f32 %v41, %v712
  %v752 = vmul.f32 %v42, %v716
  %v753 = vmul.f32 %v43, %v720
  %v754 = vmul.f32 %v44, %v724
  %v755 = vmul.f32 %v45, %v688
  %v756 = vmul.f32 %v46, %v692
  %v757 = vmul.f32 %v47, %v696
  %v758 = vmul.f32 %v48, %v700
  %v759 = vmul.f32 %v49, %v704
  %v760 = vmul.f32 %v50, %v708
  %v761 = vmul.f32 %v51, %v712
  %v762 = vmul.f32 %v52, %v716
  %v763 = vmul.f32 %v53, %v720
  %v764 = vmul.f32 %v54, %v724
  %v765 = vmul.f32 %v55, %v688
  %v766 = vmul.f32 %v56, %v692
  %v767 = vmul.f32 %v57, %v696
  %v768 = vmul.f32 %v58, %v700
  %v769 = vmul.f32 %v59, %v704
  %v770 = vmul.f32 %v60, %v708
  %v771 = vmul.f32 %v61, %v712
  %v772 = vmul.f32 %v62, %v716
  %v773 = vmul.f32 %v63, %v720
  %v774 = vmul.f32 %v64, %v724
  %v775 = vmul.f32 %v65, %v688
  %v776 = vmul.f32 %v66, %v692
  %v777 = vmul.f32 %v67, %v696
  %v778 = vmul.f32 %v68, %v700
  %v779 = vmul.f32 %v69, %v704
  %v780 = vmul.f32 %v70, %v708
  %v781 = vmul.f32 %v71, %v712
  %v782 = vmul.f32 %v72, %v716
  %v783 = vmul.f32 %v73, %v720
  %v784 = vmul.f32 %v74, %v724
  %v785 = vmul.f32 %v75, %v688
  %v786 = vmul.f32 %v76, %v692
  %v787 = vmul.f32 %v77, %v696
  %v788 = vmul.f32 %v78, %v700
  %v789 = vmul.f32 %v79, %v704
  %v790 = vmul.f32 %v80, %v708
  %v791 = vmul.f32 %v81, %v712
  %v792 = vmul.f32 %v82, %v716
  %v793 = vmul.f32 %v83, %v720
  %v794 = vmul.f32 %v84, %v724
  %v798 = vlaneseq
  %v799 = vshrl.u32 %v798, 7
  %v800 = vsub.s32 1, %v799
  %v801 = vrot.slane %v682, %v800
  %v802 = vlaneseq
  %v803 = vshrl.u32 %v802, 7
  %v804 = vsub.s32 3, %v803
  %v805 = vrot.slane %v682, %v804
  %v806 = vlaneseq
  %v807 = vshrl.u32 %v806, 7
  %v808 = vsub.s32 5, %v807
  %v809 = vrot.slane %v682, %v808
  %v810 = vlaneseq
  %v811 = vshrl.u32 %v810, 7
  %v812 = vsub.s32 7, %v811
  %v813 = vrot.slane %v682, %v812
  %v814 = vlaneseq
  %v815 = vshrl.u32 %v814, 7
  %v816 = vsub.s32 1, %v815
  %v817 = vrot.slane %v683, %v816
  %v818 = vlaneseq
  %v819 = vshrl.u32 %v818, 7
  %v820 = vsub.s32 3, %v819
  %v821 = vrot.slane %v683, %v820
  %v822 = vlaneseq
  %v823 = vshrl.u32 %v822, 7
  %v824 = vsub.s32 5, %v823
  %v825 = vrot.slane %v683, %v824
  %v826 = vlaneseq
  %v827 = vshrl.u32 %v826, 7
  %v828 = vsub.s32 7, %v827
  %v829 = vrot.slane %v683, %v828
  %v830 = vlaneseq
  %v831 = vshrl.u32 %v830, 7
  %v832 = vsub.s32 1, %v831
  %v833 = vrot.slane %v684, %v832
  %v834 = vlaneseq
  %v835 = vshrl.u32 %v834, 7
  %v836 = vsub.s32 3, %v835
  %v837 = vrot.slane %v684, %v836
  %v848 = vlaneseq
  %v849 = vshrl.u32 %v848, 7
  %v850 = vsub.s32 1, %v849
  %v851 = vrot.slane %v801, %v850
  %v852 = vlaneseq
  %v853 = vshrl.u32 %v852, 7
  %v854 = vsub.s32 1, %v853
  %v855 = vrot.slane %v805, %v854
  %v856 = vlaneseq
  %v857 = vshrl.u32 %v856, 7
  %v858 = vsub.s32 1, %v857
  %v859 = vrot.slane %v809, %v858
  %v860 = vlaneseq
  %v861 = vshrl.u32 %v860, 7
  %v862 = vsub.s32 1, %v861
  %v863 = vrot.slane %v813, %v862
  %v864 = vlaneseq
  %v865 = vshrl.u32 %v864, 7
  %v866 = vsub.s32 1, %v865
  %v867 = vrot.slane %v817, %v866
  %v868 = vlaneseq
  %v869 = vshrl.u32 %v868, 7
  %v870 = vsub.s32 1, %v869
  %v871 = vrot.slane %v821, %v870
  %v872 = vlaneseq
  %v873 = vshrl.u32 %v872, 7
  %v874 = vsub.s32 1, %v873
  %v875 = vrot.slane %v825, %v874
  %v876 = vlaneseq
  %v877 = vshrl.u32 %v876, 7
  %v878 = vsub.s32 1, %v877
  %v879 = vrot.slane %v829, %v878
  %v880 = vlaneseq
  %v881 = vshrl.u32 %v880, 7
  %v882 = vsub.s32 1, %v881
  %v883 = vrot.slane %v833, %v882
  %v884 = vlaneseq
  %v885 = vshrl.u32 %v884, 7
  %v886 = vsub.s32 1, %v885
  %v887 = vrot.slane %v837, %v886
  %v888 = vadd.f32 %v725, %v851
  %v889 = vadd.f32 %v726, %v855
  %v890 = vadd.f32 %v727, %v859
  %v891 = vadd.f32 %v728, %v863
  %v892 = vadd.f32 %v729, %v867
  %v893 = vadd.f32 %v730, %v871
  %v894 = vadd.f32 %v731, %v875
  %v895 = vadd.f32 %v732, %v879
  %v896 = vadd.f32 %v733, %v883
  %v897 = vadd.f32 %v734, %v887
  %v898 = vadd.f32 %v735, %v851
  %v899 = vadd.f32 %v736, %v855
  %v900 = vadd.f32 %v737, %v859
  %v901 = vadd.f32 %v738, %v863
  %v902 = vadd.f32 %v739, %v867
  %v903 = vadd.f32 %v740, %v871
  %v904 = vadd.f32 %v741, %v875
  %v905 = vadd.f32 %v742, %v879
  %v906 = vadd.f32 %v743, %v883
  %v907 = vadd.f32 %v744, %v887
  %v908 = vadd.f32 %v745, %v851
  %v909 = vadd.f32 %v746, %v855
  %v910 = vadd.f32 %v747, %v859
  %v911 = vadd.f32 %v748, %v863
  %v912 = vadd.f32 %v749, %v867
  %v913 = vadd.f32 %v750, %v871
  %v914 = vadd.f32 %v751, %v875
  %v915 = vadd.f32 %v752, %v879
  %v916 = vadd.f32 %v753, %v883
  %v917 = vadd.f32 %v754, %v887
  %v918 = vadd.f32 %v755, %v851
  %v919 = vadd.f32 %v756, %v855
  %v920 = vadd.f32 %v757, %v859
  %v921 = vadd.f32 %v758, %v863
  %v922 = vadd.f32 %v759, %v867
  %v923 = vadd.f32 %v760, %v871
  %v924 = vadd.f32 %v761, %v875
  %v925 = vadd.f32 %v762, %v879
  %v926 = vadd.f32 %v763, %v883
  %v927 = vadd.f32 %v764, %v887
  %v928 = vadd.f32 %v765, %v851
  %v929 = vadd.f32 %v766, %v855
  %v930 = vadd.f32 %v767, %v859
  %v931 = vadd.f32 %v768, %v863
  %v932 = vadd.f32 %v769, %v867
  %v933 = vadd.f32 %v770, %v871
  %v934 = vadd.f32 %v771, %v875
  %v935 = vadd.f32 %v772, %v879
  %v936 = vadd.f32 %v773, %v883
  %v937 = vadd.f32 %v774, %v887
  %v938 = vadd.f32 %v775, %v851
  %v939 = vadd.f32 %v776, %v855
  %v940 = vadd.f32 %v777, %v859
  %v941 = vadd.f32 %v778, %v863
  %v942 = vadd.f32 %v779, %v867
  %v943 = vadd.f32 %v780, %v871
  %v944 = vadd.f32 %v781, %v875
  %v945 = vadd.f32 %v782, %v879
  %v946 = vadd.f32 %v783, %v883
  %v947 = vadd.f32 %v784, %v887
  %v948 = vadd.f32 %v785, %v851
  %v949 = vadd.f32 %v786, %v855
  %v950 = vadd.f32 %v787, %v859
  %v951 = vadd.f32 %v788, %v863
  %v952 = vadd.f32 %v789, %v867
  %v953 = vadd.f32 %v790, %v871
  %v954 = vadd.f32 %v791, %v875
  %v955 = vadd.f32 %v792, %v879
  %v956 = vadd.f32 %v793, %v883
  %v957 = vadd.f32 %v794, %v887
  %v958 = vmax.f32 %v888, 0.0
  %v959 = vmax.f32 %v889, 0.0
  %v960 = vmax.f32 %v890, 0.0
  %v961 = vmax.f32 %v891, 0.0
  %v962 = vmax.f32 %v892, 0.0
  %v963 = vmax.f32 %v893, 0.0
  %v964 = vmax.f32 %v894, 0.0
  %v965 = vmax.f32 %v895, 0.0
  %v966 = vmax.f32 %v896, 0.0
  %v967 = vmax.f32 %v897, 0.0
  %v968 = vmax.f32 %v898, 0.0
  %v969 = vmax.f32 %v899, 0.0
  %v970 = vmax.f32 %v900, 0.0
  %v971 = vmax.f32 %v901, 0.0
  %v972 = vmax.f32 %v902, 0.0
  %v973 = vmax.f32 %v903, 0.0
  %v974 = vmax.f32 %v904, 0.0
  %v975 = vmax.f32 %v905, 0.0
  %v976 = vmax.f32 %v906, 0.0
  %v977 = vmax.f32 %v907, 0.0
  %v978 = vmax.f32 %v908, 0.0
  %v979 = vmax.f32 %v909, 0.0
  %v980 = vmax.f32 %v910, 0.0
  %v981 = vmax.f32 %v911, 0.0
  %v982 = vmax.f32 %v912, 0.0
  %v983 = vmax.f32 %v913, 0.0
  %v984 = vmax.f32 %v914, 0.0
  %v985 = vmax.f32 %v915, 0.0
  %v986 = vmax.f32 %v916, 0.0
  %v987 = vmax.f32 %v917, 0.0
  %v988 = vmax.f32 %v918, 0.0
  %v989 = vmax.f32 %v919, 0.0
  %v990 = vmax.f32 %v920, 0.0
  %v991 = vmax.f32 %v921, 0.0
  %v992 = vmax.f32 %v922, 0.0
  %v993 = vmax.f32 %v923, 0.0
  %v994 = vmax.f32 %v924, 0.0
  %v995 = vmax.f32 %v925, 0.0
  %v996 = vmax.f32 %v926, 0.0
  %v997 = vmax.f32 %v927, 0.0
  %v998 = vmax.f32 %v928, 0.0
  %v999 = vmax.f32 %v929, 0.0
  %v1000 = vmax.f32 %v930, 0.0
  %v1001 = vmax.f32 %v931, 0.0
  %v1002 = vmax.f32 %v932, 0.0
  %v1003 = vmax.f32 %v933, 0.0
  %v1004 = vmax.f32 %v934, 0.0
  %v1005 = vmax.f32 %v935, 0.0
  %v1006 = vmax.f32 %v936, 0.0
  %v1007 = vmax.f32 %v937, 0.0
  %v1008 = vmax.f32 %v938, 0.0
  %v1009 = vmax.f32 %v939, 0.0
  %v1010 = vmax.f32 %v940, 0.0
  %v1011 = vmax.f32 %v941, 0.0
  %v1012 = vmax.f32 %v942, 0.0
  %v1013 = vmax.f32 %v943, 0.0
  %v1014 = vmax.f32 %v944, 0.0
  %v1015 = vmax.f32 %v945, 0.0
  %v1016 = vmax.f32 %v946, 0.0
  %v1017 = vmax.f32 %v947, 0.0
  %v1018 = vmax.f32 %v948, 0.0
  %v1019 = vmax.f32 %v949, 0.0
  %v1020 = vmax.f32 %v950, 0.0
  %v1021 = vmax.f32 %v951, 0.0
  %v1022 = vmax.f32 %v952, 0.0
  %v1023 = vmax.f32 %v953, 0.0
  %v1024 = vmax.f32 %v954, 0.0
  %v1025 = vmax.f32 %v955, 0.0
  %v1026 = vmax.f32 %v956, 0.0
  %v1027 = vmax.f32 %v957, 0.0
  %v1028 = vpack.c.bf16 %v968, %v958
  %v1029 = vpack.c.bf16 %v969, %v959
  %v1030 = vpack.c.bf16 %v970, %v960
  %v1031 = vpack.c.bf16 %v971, %v961
  %v1032 = vpack.c.bf16 %v972, %v962
  %v1033 = vpack.c.bf16 %v973, %v963
  %v1034 = vpack.c.bf16 %v974, %v964
  %v1035 = vpack.c.bf16 %v975, %v965
  %v1036 = vpack.c.bf16 %v976, %v966
  %v1037 = vpack.c.bf16 %v977, %v967
  %v1038 = vpack.c.bf16 %v988, %v978
  %v1039 = vpack.c.bf16 %v989, %v979
  %v1040 = vpack.c.bf16 %v990, %v980
  %v1041 = vpack.c.bf16 %v991, %v981
  %v1042 = vpack.c.bf16 %v992, %v982
  %v1043 = vpack.c.bf16 %v993, %v983
  %v1044 = vpack.c.bf16 %v994, %v984
  %v1045 = vpack.c.bf16 %v995, %v985
  %v1046 = vpack.c.bf16 %v996, %v986
  %v1047 = vpack.c.bf16 %v997, %v987
  %v1048 = vpack.c.bf16 %v1008, %v998
  %v1049 = vpack.c.bf16 %v1009, %v999
  %v1050 = vpack.c.bf16 %v1010, %v1000
  %v1051 = vpack.c.bf16 %v1011, %v1001
  %v1052 = vpack.c.bf16 %v1012, %v1002
  %v1053 = vpack.c.bf16 %v1013, %v1003
  %v1054 = vpack.c.bf16 %v1014, %v1004
  %v1055 = vpack.c.bf16 %v1015, %v1005
  %v1056 = vpack.c.bf16 %v1016, %v1006
  %v1057 = vpack.c.bf16 %v1017, %v1007
  %v1058 = vpack.c.bf16 %v1018, %v1018
  %v1059 = vpack.c.bf16 %v1019, %v1019
  %v1060 = vpack.c.bf16 %v1020, %v1020
  %v1061 = vpack.c.bf16 %v1021, %v1021
  %v1062 = vpack.c.bf16 %v1022, %v1022
  %v1063 = vpack.c.bf16 %v1023, %v1023
  %v1064 = vpack.c.bf16 %v1024, %v1024
  %v1065 = vpack.c.bf16 %v1025, %v1025
  %v1066 = vpack.c.bf16 %v1026, %v1026
  %v1067 = vpack.c.bf16 %v1027, %v1027
  %v1068 = vld [vmem:[%s2] sm:$0xff]
  %v1069 = vld [vmem:[%s2 + $0x8] sm:$0xff]
  %v1070 = vld [vmem:[%s2 + $0x10] sm:$0xff]
  %v1071 = vld [vmem:[%s2 + $0x18] sm:$0xff]
  %v1072 = vld [vmem:[%s2 + $0x20] sm:$0xff]
  %v1073 = vld [vmem:[%s2 + $0x28] sm:$0xff]
  %v1074 = vld [vmem:[%s2 + $0x30] sm:$0xff]
  %v1075 = vld [vmem:[%s2 + $0x38] sm:$0xff]
  %v1076 = vld [vmem:[%s2 + $0x40] sm:$0xff]
  %v1077 = vld [vmem:[%s2 + $0x48] sm:$0xff]
  %v1078 = vld [vmem:[%s2 + $0x50] sm:$0xff]
  %v1079 = vld [vmem:[%s2 + $0x58] sm:$0xff]
  %v1080 = vld [vmem:[%s2 + $0x60] sm:$0xff]
  %v1081 = vld [vmem:[%s2 + $0x68] sm:$0xff]
  %v1082 = vld [vmem:[%s2 + $0x70] sm:$0xff]
  %v1083 = vld [vmem:[%s2 + $0x78] sm:$0xff]
  %v1084 = vld [vmem:[%s2 + $0x80] sm:$0xff]
  %v1085 = vld [vmem:[%s2 + $0x88] sm:$0xff]
  %v1086 = vld [vmem:[%s2 + $0x90] sm:$0xff]
  %v1087 = vld [vmem:[%s2 + $0x98] sm:$0xff]
  %v1088 = vld [vmem:[%s2 + $0xa0] sm:$0xff]
  %v1089 = vld [vmem:[%s2 + $0xa8] sm:$0xff]
  %v1090 = vld [vmem:[%s2 + $0xb0] sm:$0xff]
  %v1091 = vld [vmem:[%s2 + $0xb8] sm:$0xff]
  %v1092 = vld [vmem:[%s2 + $0xc0] sm:$0xff]
  %v1093 = vld [vmem:[%s2 + $0xc8] sm:$0xff]
  %v1094 = vld [vmem:[%s2 + $0xd0] sm:$0xff]
  %v1095 = vld [vmem:[%s2 + $0xd8] sm:$0xff]
  %v1096 = vld [vmem:[%s2 + $0xe0] sm:$0xff]
  %v1097 = vld [vmem:[%s2 + $0xe8] sm:$0xff]
  %v1098 = vld [vmem:[%s2 + $0xf0] sm:$0xff]
  %v1099 = vld [vmem:[%s2 + $0xf8] sm:$0xff]
  %v1100 = vld [vmem:[%s2 + $0x100] sm:$0xff]
  %v1101 = vld [vmem:[%s2 + $0x108] sm:$0xff]
  %v1102 = vld [vmem:[%s2 + $0x110] sm:$0xff]
  %v1103 = vld [vmem:[%s2 + $0x118] sm:$0xff]
  %v1104 = vld [vmem:[%s2 + $0x120] sm:$0xff]
  %v1105 = vld [vmem:[%s2 + $0x128] sm:$0xff]
  %v1106 = vld [vmem:[%s2 + $0x130] sm:$0xff]
  %v1107 = vld [vmem:[%s2 + $0x138] sm:$0xff]
  %v1108 = vld [vmem:[%s2 + $0x140] sm:$0xff]
  %v1109 = vld [vmem:[%s2 + $0x148] sm:$0xff]
  %v1110 = vld [vmem:[%s2 + $0x150] sm:$0xff]
  %v1111 = vld [vmem:[%s2 + $0x158] sm:$0xff]
  %v1112 = vld [vmem:[%s2 + $0x160] sm:$0xff]
  %v1113 = vld [vmem:[%s2 + $0x168] sm:$0xff]
  %v1114 = vld [vmem:[%s2 + $0x170] sm:$0xff]
  %v1115 = vld [vmem:[%s2 + $0x178] sm:$0xff]
  %v1116 = vld [vmem:[%s2 + $0x180] sm:$0xff]
  %v1117 = vld [vmem:[%s2 + $0x188] sm:$0xff]
  %v1118 = vld [vmem:[%s2 + $0x190] sm:$0xff]
  %v1119 = vld [vmem:[%s2 + $0x198] sm:$0xff]
  %v1120 = vld [vmem:[%s2 + $0x1a0] sm:$0xff]
  %v1121 = vld [vmem:[%s2 + $0x1a8] sm:$0xff]
  %v1122 = vld [vmem:[%s2 + $0x1b0] sm:$0xff]
  %v1123 = vld [vmem:[%s2 + $0x1b8] sm:$0xff]
  %v1124 = vld [vmem:[%s2 + $0x1c0] sm:$0xff]
  %v1125 = vld [vmem:[%s2 + $0x1c8] sm:$0xff]
  %v1126 = vld [vmem:[%s2 + $0x1d0] sm:$0xff]
  %v1127 = vld [vmem:[%s2 + $0x1d8] sm:$0xff]
  %v1128 = vld [vmem:[%s2 + $0x1e0] sm:$0xff]
  %v1129 = vld [vmem:[%s2 + $0x1e8] sm:$0xff]
  %v1130 = vld [vmem:[%s2 + $0x1f0] sm:$0xff]
  %v1131 = vld [vmem:[%s2 + $0x1f8] sm:$0xff]
  %v1132 = vld [vmem:[%s2 + $0x200] sm:$0xff]
  %v1133 = vld [vmem:[%s2 + $0x208] sm:$0xff]
  %v1134 = vld [vmem:[%s2 + $0x210] sm:$0xff]
  %v1135 = vld [vmem:[%s2 + $0x218] sm:$0xff]
  %v1136 = vld [vmem:[%s2 + $0x220] sm:$0xff]
  %v1137 = vld [vmem:[%s2 + $0x228] sm:$0xff]
  %v1138 = vld [vmem:[%s2 + $0x230] sm:$0xff]
  %v1139 = vld [vmem:[%s2 + $0x238] sm:$0xff]
  %v1140 = vld [vmem:[%s2 + $0x240] sm:$0xff]
  %v1141 = vld [vmem:[%s2 + $0x248] sm:$0xff]
  %v1142 = vld [vmem:[%s2 + $0x250] sm:$0xff]
  %v1143 = vld [vmem:[%s2 + $0x258] sm:$0xff]
  %v1144 = vld [vmem:[%s2 + $0x260] sm:$0xff]
  %v1145 = vld [vmem:[%s2 + $0x268] sm:$0xff]
  %v1146 = vld [vmem:[%s2 + $0x270] sm:$0xff]
  %v1147 = vld [vmem:[%s2 + $0x278] sm:$0xff]
  %v1148 = vld [vmem:[%s2 + $0x280] sm:$0xff]
  %v1149 = vld [vmem:[%s2 + $0x288] sm:$0xff]
  %v1150 = vld [vmem:[%s2 + $0x290] sm:$0xff]
  %v1151 = vld [vmem:[%s2 + $0x298] sm:$0xff]
  %v1152 = vld [vmem:[%s2 + $0x2a0] sm:$0xff]
  %v1153 = vld [vmem:[%s2 + $0x2a8] sm:$0xff]
  %v1154 = vld [vmem:[%s2 + $0x2b0] sm:$0xff]
  %v1155 = vld [vmem:[%s2 + $0x2b8] sm:$0xff]
  %v1156 = vld [vmem:[%s2 + $0x2c0] sm:$0xff]
  %v1157 = vld [vmem:[%s2 + $0x2c8] sm:$0xff]
  %v1158 = vld [vmem:[%s2 + $0x2d0] sm:$0xff]
  %v1159 = vld [vmem:[%s2 + $0x2d8] sm:$0xff]
  %v1160 = vld [vmem:[%s2 + $0x2e0] sm:$0xff]
  %v1161 = vld [vmem:[%s2 + $0x2e8] sm:$0xff]
  %v1162 = vld [vmem:[%s2 + $0x2f0] sm:$0xff]
  %v1163 = vld [vmem:[%s2 + $0x2f8] sm:$0xff]
  %v1164 = vld [vmem:[%s2 + $0x300] sm:$0xff]
  %v1165 = vld [vmem:[%s2 + $0x308] sm:$0xff]
  %v1166 = vld [vmem:[%s2 + $0x310] sm:$0xff]
  %v1167 = vld [vmem:[%s2 + $0x318] sm:$0xff]
  %v1168 = vld [vmem:[%s2 + $0x320] sm:$0xff]
  %v1169 = vld [vmem:[%s2 + $0x328] sm:$0xff]
  %v1170 = vld [vmem:[%s2 + $0x330] sm:$0xff]
  %v1171 = vld [vmem:[%s2 + $0x338] sm:$0xff]
  %v1172 = vld [vmem:[%s2 + $0x340] sm:$0xff]
  %v1173 = vld [vmem:[%s2 + $0x348] sm:$0xff]
  %v1174 = vld [vmem:[%s2 + $0x350] sm:$0xff]
  %v1175 = vld [vmem:[%s2 + $0x358] sm:$0xff]
  %v1176 = vld [vmem:[%s2 + $0x360] sm:$0xff]
  %v1177 = vld [vmem:[%s2 + $0x368] sm:$0xff]
  %v1178 = vld [vmem:[%s2 + $0x370] sm:$0xff]
  %v1179 = vld [vmem:[%s2 + $0x378] sm:$0xff]
  %v1180 = vld [vmem:[%s2 + $0x380] sm:$0xff]
  %v1181 = vld [vmem:[%s2 + $0x388] sm:$0xff]
  %v1182 = vld [vmem:[%s2 + $0x390] sm:$0xff]
  %v1183 = vld [vmem:[%s2 + $0x398] sm:$0xff]
  %v1184 = vld [vmem:[%s2 + $0x3a0] sm:$0xff]
  %v1185 = vld [vmem:[%s2 + $0x3a8] sm:$0xff]
  %v1186 = vld [vmem:[%s2 + $0x3b0] sm:$0xff]
  %v1187 = vld [vmem:[%s2 + $0x3b8] sm:$0xff]
  %v1188 = vld [vmem:[%s2 + $0x3c0] sm:$0xff]
  %v1189 = vld [vmem:[%s2 + $0x3c8] sm:$0xff]
  %v1190 = vld [vmem:[%s2 + $0x3d0] sm:$0xff]
  %v1191 = vld [vmem:[%s2 + $0x3d8] sm:$0xff]
  %v1192 = vld [vmem:[%s2 + $0x3e0] sm:$0xff]
  %v1193 = vld [vmem:[%s2 + $0x3e8] sm:$0xff]
  %v1194 = vld [vmem:[%s2 + $0x3f0] sm:$0xff]
  %v1195 = vld [vmem:[%s2 + $0x3f8] sm:$0xff]
  %v1196 = vld [vmem:[%s2 + $0x400] sm:$0xff]
  %v1197 = vld [vmem:[%s2 + $0x408] sm:$0xff]
  %v1198 = vld [vmem:[%s2 + $0x410] sm:$0xff]
  %v1199 = vld [vmem:[%s2 + $0x418] sm:$0xff]
  %v1200 = vld [vmem:[%s2 + $0x420] sm:$0xff]
  %v1201 = vld [vmem:[%s2 + $0x428] sm:$0xff]
  %v1202 = vld [vmem:[%s2 + $0x430] sm:$0xff]
  %v1203 = vld [vmem:[%s2 + $0x438] sm:$0xff]
  %v1204 = vld [vmem:[%s2 + $0x440] sm:$0xff]
  %v1205 = vld [vmem:[%s2 + $0x448] sm:$0xff]
  %v1206 = vld [vmem:[%s2 + $0x450] sm:$0xff]
  %v1207 = vld [vmem:[%s2 + $0x458] sm:$0xff]
  %v1208 = vld [vmem:[%s2 + $0x460] sm:$0xff]
  %v1209 = vld [vmem:[%s2 + $0x468] sm:$0xff]
  %v1210 = vld [vmem:[%s2 + $0x470] sm:$0xff]
  %v1211 = vld [vmem:[%s2 + $0x478] sm:$0xff]
  %v1212 = vld [vmem:[%s2 + $0x480] sm:$0xff]
  %v1213 = vld [vmem:[%s2 + $0x488] sm:$0xff]
  %v1214 = vld [vmem:[%s2 + $0x490] sm:$0xff]
  %v1215 = vld [vmem:[%s2 + $0x498] sm:$0xff]
  %v1216 = vld [vmem:[%s2 + $0x4a0] sm:$0xff]
  %v1217 = vld [vmem:[%s2 + $0x4a8] sm:$0xff]
  %v1368 = vunpack.c.l.b16 %v1068
  %v1369 = vunpack.c.h.b16 %v1068
  %v1370 = vunpack.c.l.b16 %v1069
  %v1371 = vunpack.c.h.b16 %v1069
  %v1372 = vunpack.c.l.b16 %v1070
  %v1373 = vunpack.c.h.b16 %v1070
  %v1374 = vunpack.c.l.b16 %v1071
  %v1375 = vunpack.c.h.b16 %v1071
  %v1376 = vunpack.c.l.b16 %v1072
  %v1377 = vunpack.c.h.b16 %v1072
  %v1378 = vunpack.c.l.b16 %v1073
  %v1379 = vunpack.c.h.b16 %v1073
  %v1380 = vunpack.c.l.b16 %v1074
  %v1381 = vunpack.c.h.b16 %v1074
  %v1382 = vunpack.c.l.b16 %v1075
  %v1383 = vunpack.c.h.b16 %v1075
  %v1384 = vunpack.c.l.b16 %v1076
  %v1385 = vunpack.c.h.b16 %v1076
  %v1386 = vunpack.c.l.b16 %v1077
  %v1387 = vunpack.c.h.b16 %v1077
  %v1388 = vunpack.c.l.b16 %v1078
  %v1389 = vunpack.c.h.b16 %v1078
  %v1390 = vunpack.c.l.b16 %v1079
  %v1391 = vunpack.c.h.b16 %v1079
  %v1392 = vunpack.c.l.b16 %v1080
  %v1393 = vunpack.c.h.b16 %v1080
  %v1394 = vunpack.c.l.b16 %v1081
  %v1395 = vunpack.c.h.b16 %v1081
  %v1396 = vunpack.c.l.b16 %v1082
  %v1397 = vunpack.c.h.b16 %v1082
  %v1398 = vunpack.c.l.b16 %v1083
  %v1399 = vunpack.c.h.b16 %v1083
  %v1400 = vunpack.c.l.b16 %v1084
  %v1401 = vunpack.c.h.b16 %v1084
  %v1402 = vunpack.c.l.b16 %v1085
  %v1403 = vunpack.c.h.b16 %v1085
  %v1404 = vunpack.c.l.b16 %v1086
  %v1405 = vunpack.c.h.b16 %v1086
  %v1406 = vunpack.c.l.b16 %v1087
  %v1407 = vunpack.c.h.b16 %v1087
  %v1408 = vunpack.c.l.b16 %v1088
  %v1409 = vunpack.c.h.b16 %v1088
  %v1410 = vunpack.c.l.b16 %v1089
  %v1411 = vunpack.c.h.b16 %v1089
  %v1412 = vunpack.c.l.b16 %v1090
  %v1413 = vunpack.c.h.b16 %v1090
  %v1414 = vunpack.c.l.b16 %v1091
  %v1415 = vunpack.c.h.b16 %v1091
  %v1416 = vunpack.c.l.b16 %v1092
  %v1417 = vunpack.c.h.b16 %v1092
  %v1418 = vunpack.c.l.b16 %v1093
  %v1419 = vunpack.c.h.b16 %v1093
  %v1420 = vunpack.c.l.b16 %v1094
  %v1421 = vunpack.c.h.b16 %v1094
  %v1422 = vunpack.c.l.b16 %v1095
  %v1423 = vunpack.c.h.b16 %v1095
  %v1424 = vunpack.c.l.b16 %v1096
  %v1425 = vunpack.c.h.b16 %v1096
  %v1426 = vunpack.c.l.b16 %v1097
  %v1427 = vunpack.c.h.b16 %v1097
  %v1428 = vunpack.c.l.b16 %v1098
  %v1429 = vunpack.c.h.b16 %v1098
  %v1430 = vunpack.c.l.b16 %v1099
  %v1431 = vunpack.c.h.b16 %v1099
  %v1432 = vunpack.c.l.b16 %v1100
  %v1433 = vunpack.c.h.b16 %v1100
  %v1434 = vunpack.c.l.b16 %v1101
  %v1435 = vunpack.c.h.b16 %v1101
  %v1436 = vunpack.c.l.b16 %v1102
  %v1437 = vunpack.c.h.b16 %v1102
  %v1438 = vunpack.c.l.b16 %v1103
  %v1439 = vunpack.c.h.b16 %v1103
  %v1440 = vunpack.c.l.b16 %v1104
  %v1441 = vunpack.c.h.b16 %v1104
  %v1442 = vunpack.c.l.b16 %v1105
  %v1443 = vunpack.c.h.b16 %v1105
  %v1444 = vunpack.c.l.b16 %v1106
  %v1445 = vunpack.c.h.b16 %v1106
  %v1446 = vunpack.c.l.b16 %v1107
  %v1447 = vunpack.c.h.b16 %v1107
  %v1448 = vunpack.c.l.b16 %v1108
  %v1449 = vunpack.c.h.b16 %v1108
  %v1450 = vunpack.c.l.b16 %v1109
  %v1451 = vunpack.c.h.b16 %v1109
  %v1452 = vunpack.c.l.b16 %v1110
  %v1453 = vunpack.c.h.b16 %v1110
  %v1454 = vunpack.c.l.b16 %v1111
  %v1455 = vunpack.c.h.b16 %v1111
  %v1456 = vunpack.c.l.b16 %v1112
  %v1457 = vunpack.c.h.b16 %v1112
  %v1458 = vunpack.c.l.b16 %v1113
  %v1459 = vunpack.c.h.b16 %v1113
  %v1460 = vunpack.c.l.b16 %v1114
  %v1461 = vunpack.c.h.b16 %v1114
  %v1462 = vunpack.c.l.b16 %v1115
  %v1463 = vunpack.c.h.b16 %v1115
  %v1464 = vunpack.c.l.b16 %v1116
  %v1465 = vunpack.c.h.b16 %v1116
  %v1466 = vunpack.c.l.b16 %v1117
  %v1467 = vunpack.c.h.b16 %v1117
  %v1468 = vunpack.c.l.b16 %v1118
  %v1469 = vunpack.c.h.b16 %v1118
  %v1470 = vunpack.c.l.b16 %v1119
  %v1471 = vunpack.c.h.b16 %v1119
  %v1472 = vunpack.c.l.b16 %v1120
  %v1473 = vunpack.c.h.b16 %v1120
  %v1474 = vunpack.c.l.b16 %v1121
  %v1475 = vunpack.c.h.b16 %v1121
  %v1476 = vunpack.c.l.b16 %v1122
  %v1477 = vunpack.c.h.b16 %v1122
  %v1478 = vunpack.c.l.b16 %v1123
  %v1479 = vunpack.c.h.b16 %v1123
  %v1480 = vunpack.c.l.b16 %v1124
  %v1481 = vunpack.c.h.b16 %v1124
  %v1482 = vunpack.c.l.b16 %v1125
  %v1483 = vunpack.c.h.b16 %v1125
  %v1484 = vunpack.c.l.b16 %v1126
  %v1485 = vunpack.c.h.b16 %v1126
  %v1486 = vunpack.c.l.b16 %v1127
  %v1487 = vunpack.c.h.b16 %v1127
  %v1488 = vunpack.c.l.b16 %v1128
  %v1489 = vunpack.c.h.b16 %v1128
  %v1490 = vunpack.c.l.b16 %v1129
  %v1491 = vunpack.c.h.b16 %v1129
  %v1492 = vunpack.c.l.b16 %v1130
  %v1493 = vunpack.c.h.b16 %v1130
  %v1494 = vunpack.c.l.b16 %v1131
  %v1495 = vunpack.c.h.b16 %v1131
  %v1496 = vunpack.c.l.b16 %v1132
  %v1497 = vunpack.c.h.b16 %v1132
  %v1498 = vunpack.c.l.b16 %v1133
  %v1499 = vunpack.c.h.b16 %v1133
  %v1500 = vunpack.c.l.b16 %v1134
  %v1501 = vunpack.c.h.b16 %v1134
  %v1502 = vunpack.c.l.b16 %v1135
  %v1503 = vunpack.c.h.b16 %v1135
  %v1504 = vunpack.c.l.b16 %v1136
  %v1505 = vunpack.c.h.b16 %v1136
  %v1506 = vunpack.c.l.b16 %v1137
  %v1507 = vunpack.c.h.b16 %v1137
  %v1508 = vunpack.c.l.b16 %v1138
  %v1509 = vunpack.c.h.b16 %v1138
  %v1510 = vunpack.c.l.b16 %v1139
  %v1511 = vunpack.c.h.b16 %v1139
  %v1512 = vunpack.c.l.b16 %v1140
  %v1513 = vunpack.c.h.b16 %v1140
  %v1514 = vunpack.c.l.b16 %v1141
  %v1515 = vunpack.c.h.b16 %v1141
  %v1516 = vunpack.c.l.b16 %v1142
  %v1517 = vunpack.c.h.b16 %v1142
  %v1518 = vunpack.c.l.b16 %v1143
  %v1519 = vunpack.c.h.b16 %v1143
  %v1520 = vunpack.c.l.b16 %v1144
  %v1521 = vunpack.c.h.b16 %v1144
  %v1522 = vunpack.c.l.b16 %v1145
  %v1523 = vunpack.c.h.b16 %v1145
  %v1524 = vunpack.c.l.b16 %v1146
  %v1525 = vunpack.c.h.b16 %v1146
  %v1526 = vunpack.c.l.b16 %v1147
  %v1527 = vunpack.c.h.b16 %v1147
  %v1528 = vunpack.c.l.b16 %v1148
  %v1529 = vunpack.c.h.b16 %v1148
  %v1530 = vunpack.c.l.b16 %v1149
  %v1531 = vunpack.c.h.b16 %v1149
  %v1532 = vunpack.c.l.b16 %v1150
  %v1533 = vunpack.c.h.b16 %v1150
  %v1534 = vunpack.c.l.b16 %v1151
  %v1535 = vunpack.c.h.b16 %v1151
  %v1536 = vunpack.c.l.b16 %v1152
  %v1537 = vunpack.c.h.b16 %v1152
  %v1538 = vunpack.c.l.b16 %v1153
  %v1539 = vunpack.c.h.b16 %v1153
  %v1540 = vunpack.c.l.b16 %v1154
  %v1541 = vunpack.c.h.b16 %v1154
  %v1542 = vunpack.c.l.b16 %v1155
  %v1543 = vunpack.c.h.b16 %v1155
  %v1544 = vunpack.c.l.b16 %v1156
  %v1545 = vunpack.c.h.b16 %v1156
  %v1546 = vunpack.c.l.b16 %v1157
  %v1547 = vunpack.c.h.b16 %v1157
  %v1548 = vunpack.c.l.b16 %v1158
  %v1549 = vunpack.c.h.b16 %v1158
  %v1550 = vunpack.c.l.b16 %v1159
  %v1551 = vunpack.c.h.b16 %v1159
  %v1552 = vunpack.c.l.b16 %v1160
  %v1553 = vunpack.c.h.b16 %v1160
  %v1554 = vunpack.c.l.b16 %v1161
  %v1555 = vunpack.c.h.b16 %v1161
  %v1556 = vunpack.c.l.b16 %v1162
  %v1557 = vunpack.c.h.b16 %v1162
  %v1558 = vunpack.c.l.b16 %v1163
  %v1559 = vunpack.c.h.b16 %v1163
  %v1560 = vunpack.c.l.b16 %v1164
  %v1561 = vunpack.c.h.b16 %v1164
  %v1562 = vunpack.c.l.b16 %v1165
  %v1563 = vunpack.c.h.b16 %v1165
  %v1564 = vunpack.c.l.b16 %v1166
  %v1565 = vunpack.c.h.b16 %v1166
  %v1566 = vunpack.c.l.b16 %v1167
  %v1567 = vunpack.c.h.b16 %v1167
  %v1568 = vunpack.c.l.b16 %v1168
  %v1569 = vunpack.c.h.b16 %v1168
  %v1570 = vunpack.c.l.b16 %v1169
  %v1571 = vunpack.c.h.b16 %v1169
  %v1572 = vunpack.c.l.b16 %v1170
  %v1573 = vunpack.c.h.b16 %v1170
  %v1574 = vunpack.c.l.b16 %v1171
  %v1575 = vunpack.c.h.b16 %v1171
  %v1576 = vunpack.c.l.b16 %v1172
  %v1577 = vunpack.c.h.b16 %v1172
  %v1578 = vunpack.c.l.b16 %v1173
  %v1579 = vunpack.c.h.b16 %v1173
  %v1580 = vunpack.c.l.b16 %v1174
  %v1581 = vunpack.c.h.b16 %v1174
  %v1582 = vunpack.c.l.b16 %v1175
  %v1583 = vunpack.c.h.b16 %v1175
  %v1584 = vunpack.c.l.b16 %v1176
  %v1585 = vunpack.c.h.b16 %v1176
  %v1586 = vunpack.c.l.b16 %v1177
  %v1587 = vunpack.c.h.b16 %v1177
  %v1588 = vunpack.c.l.b16 %v1178
  %v1589 = vunpack.c.h.b16 %v1178
  %v1590 = vunpack.c.l.b16 %v1179
  %v1591 = vunpack.c.h.b16 %v1179
  %v1592 = vunpack.c.l.b16 %v1180
  %v1593 = vunpack.c.h.b16 %v1180
  %v1594 = vunpack.c.l.b16 %v1181
  %v1595 = vunpack.c.h.b16 %v1181
  %v1596 = vunpack.c.l.b16 %v1182
  %v1597 = vunpack.c.h.b16 %v1182
  %v1598 = vunpack.c.l.b16 %v1183
  %v1599 = vunpack.c.h.b16 %v1183
  %v1600 = vunpack.c.l.b16 %v1184
  %v1601 = vunpack.c.h.b16 %v1184
  %v1602 = vunpack.c.l.b16 %v1185
  %v1603 = vunpack.c.h.b16 %v1185
  %v1604 = vunpack.c.l.b16 %v1186
  %v1605 = vunpack.c.h.b16 %v1186
  %v1606 = vunpack.c.l.b16 %v1187
  %v1607 = vunpack.c.h.b16 %v1187
  %v1608 = vunpack.c.l.b16 %v1188
  %v1609 = vunpack.c.h.b16 %v1188
  %v1610 = vunpack.c.l.b16 %v1189
  %v1611 = vunpack.c.h.b16 %v1189
  %v1612 = vunpack.c.l.b16 %v1190
  %v1613 = vunpack.c.h.b16 %v1190
  %v1614 = vunpack.c.l.b16 %v1191
  %v1615 = vunpack.c.h.b16 %v1191
  %v1616 = vunpack.c.l.b16 %v1192
  %v1617 = vunpack.c.h.b16 %v1192
  %v1618 = vunpack.c.l.b16 %v1193
  %v1619 = vunpack.c.h.b16 %v1193
  %v1620 = vunpack.c.l.b16 %v1194
  %v1621 = vunpack.c.h.b16 %v1194
  %v1622 = vunpack.c.l.b16 %v1195
  %v1623 = vunpack.c.h.b16 %v1195
  %v1624 = vunpack.c.l.b16 %v1196
  %v1625 = vunpack.c.h.b16 %v1196
  %v1626 = vunpack.c.l.b16 %v1197
  %v1627 = vunpack.c.h.b16 %v1197
  %v1628 = vunpack.c.l.b16 %v1198
  %v1629 = vunpack.c.h.b16 %v1198
  %v1630 = vunpack.c.l.b16 %v1199
  %v1631 = vunpack.c.h.b16 %v1199
  %v1632 = vunpack.c.l.b16 %v1200
  %v1633 = vunpack.c.h.b16 %v1200
  %v1634 = vunpack.c.l.b16 %v1201
  %v1635 = vunpack.c.h.b16 %v1201
  %v1636 = vunpack.c.l.b16 %v1202
  %v1637 = vunpack.c.h.b16 %v1202
  %v1638 = vunpack.c.l.b16 %v1203
  %v1639 = vunpack.c.h.b16 %v1203
  %v1640 = vunpack.c.l.b16 %v1204
  %v1641 = vunpack.c.h.b16 %v1204
  %v1642 = vunpack.c.l.b16 %v1205
  %v1643 = vunpack.c.h.b16 %v1205
  %v1644 = vunpack.c.l.b16 %v1206
  %v1645 = vunpack.c.h.b16 %v1206
  %v1646 = vunpack.c.l.b16 %v1207
  %v1647 = vunpack.c.h.b16 %v1207
  %v1648 = vunpack.c.l.b16 %v1208
  %v1649 = vunpack.c.h.b16 %v1208
  %v1650 = vunpack.c.l.b16 %v1209
  %v1651 = vunpack.c.h.b16 %v1209
  %v1652 = vunpack.c.l.b16 %v1210
  %v1653 = vunpack.c.h.b16 %v1210
  %v1654 = vunpack.c.l.b16 %v1211
  %v1655 = vunpack.c.h.b16 %v1211
  %v1656 = vunpack.c.l.b16 %v1212
  %v1657 = vunpack.c.h.b16 %v1212
  %v1658 = vunpack.c.l.b16 %v1213
  %v1659 = vunpack.c.h.b16 %v1213
  %v1660 = vunpack.c.l.b16 %v1214
  %v1661 = vunpack.c.h.b16 %v1214
  %v1662 = vunpack.c.l.b16 %v1215
  %v1663 = vunpack.c.h.b16 %v1215
  %v1664 = vunpack.c.l.b16 %v1216
  %v1665 = vunpack.c.h.b16 %v1216
  %v1666 = vunpack.c.l.b16 %v1217
  %v1667 = vunpack.c.h.b16 %v1217
  %v1668 = vpack.c.b16 %v1370, %v1368
  %v1669 = vpack.c.b16 %v1371, %v1369
  %v1670 = vpack.c.b16 %v1374, %v1372
  %v1671 = vpack.c.b16 %v1375, %v1373
  %v1672 = vpack.c.b16 %v1378, %v1376
  %v1673 = vpack.c.b16 %v1379, %v1377
  %v1674 = vpack.c.b16 %v1382, %v1380
  %v1675 = vpack.c.b16 %v1383, %v1381
  %v1676 = vpack.c.b16 %v1386, %v1384
  %v1677 = vpack.c.b16 %v1387, %v1385
  %v1678 = vpack.c.b16 %v1390, %v1388
  %v1679 = vpack.c.b16 %v1391, %v1389
  %v1680 = vpack.c.b16 %v1394, %v1392
  %v1681 = vpack.c.b16 %v1395, %v1393
  %v1682 = vpack.c.b16 %v1398, %v1396
  %v1683 = vpack.c.b16 %v1399, %v1397
  %v1684 = vpack.c.b16 %v1402, %v1400
  %v1685 = vpack.c.b16 %v1403, %v1401
  %v1686 = vpack.c.b16 %v1406, %v1404
  %v1687 = vpack.c.b16 %v1407, %v1405
  %v1688 = vpack.c.b16 %v1410, %v1408
  %v1689 = vpack.c.b16 %v1411, %v1409
  %v1690 = vpack.c.b16 %v1414, %v1412
  %v1691 = vpack.c.b16 %v1415, %v1413
  %v1692 = vpack.c.b16 %v1418, %v1416
  %v1693 = vpack.c.b16 %v1419, %v1417
  %v1694 = vpack.c.b16 %v1422, %v1420
  %v1695 = vpack.c.b16 %v1423, %v1421
  %v1696 = vpack.c.b16 %v1426, %v1424
  %v1697 = vpack.c.b16 %v1427, %v1425
  %v1698 = vpack.c.b16 %v1430, %v1428
  %v1699 = vpack.c.b16 %v1431, %v1429
  %v1700 = vpack.c.b16 %v1434, %v1432
  %v1701 = vpack.c.b16 %v1435, %v1433
  %v1702 = vpack.c.b16 %v1438, %v1436
  %v1703 = vpack.c.b16 %v1439, %v1437
  %v1704 = vpack.c.b16 %v1442, %v1440
  %v1705 = vpack.c.b16 %v1443, %v1441
  %v1706 = vpack.c.b16 %v1446, %v1444
  %v1707 = vpack.c.b16 %v1447, %v1445
  %v1708 = vpack.c.b16 %v1450, %v1448
  %v1709 = vpack.c.b16 %v1451, %v1449
  %v1710 = vpack.c.b16 %v1454, %v1452
  %v1711 = vpack.c.b16 %v1455, %v1453
  %v1712 = vpack.c.b16 %v1458, %v1456
  %v1713 = vpack.c.b16 %v1459, %v1457
  %v1714 = vpack.c.b16 %v1462, %v1460
  %v1715 = vpack.c.b16 %v1463, %v1461
  %v1716 = vpack.c.b16 %v1466, %v1464
  %v1717 = vpack.c.b16 %v1467, %v1465
  %v1718 = vpack.c.b16 %v1470, %v1468
  %v1719 = vpack.c.b16 %v1471, %v1469
  %v1720 = vpack.c.b16 %v1474, %v1472
  %v1721 = vpack.c.b16 %v1475, %v1473
  %v1722 = vpack.c.b16 %v1478, %v1476
  %v1723 = vpack.c.b16 %v1479, %v1477
  %v1724 = vpack.c.b16 %v1482, %v1480
  %v1725 = vpack.c.b16 %v1483, %v1481
  %v1726 = vpack.c.b16 %v1486, %v1484
  %v1727 = vpack.c.b16 %v1487, %v1485
  %v1728 = vpack.c.b16 %v1490, %v1488
  %v1729 = vpack.c.b16 %v1491, %v1489
  %v1730 = vpack.c.b16 %v1494, %v1492
  %v1731 = vpack.c.b16 %v1495, %v1493
  %v1732 = vpack.c.b16 %v1498, %v1496
  %v1733 = vpack.c.b16 %v1499, %v1497
  %v1734 = vpack.c.b16 %v1502, %v1500
  %v1735 = vpack.c.b16 %v1503, %v1501
  %v1736 = vpack.c.b16 %v1506, %v1504
  %v1737 = vpack.c.b16 %v1507, %v1505
  %v1738 = vpack.c.b16 %v1510, %v1508
  %v1739 = vpack.c.b16 %v1511, %v1509
  %v1740 = vpack.c.b16 %v1514, %v1512
  %v1741 = vpack.c.b16 %v1515, %v1513
  %v1742 = vpack.c.b16 %v1518, %v1516
  %v1743 = vpack.c.b16 %v1519, %v1517
  %v1744 = vpack.c.b16 %v1522, %v1520
  %v1745 = vpack.c.b16 %v1523, %v1521
  %v1746 = vpack.c.b16 %v1526, %v1524
  %v1747 = vpack.c.b16 %v1527, %v1525
  %v1748 = vpack.c.b16 %v1530, %v1528
  %v1749 = vpack.c.b16 %v1531, %v1529
  %v1750 = vpack.c.b16 %v1534, %v1532
  %v1751 = vpack.c.b16 %v1535, %v1533
  %v1752 = vpack.c.b16 %v1538, %v1536
  %v1753 = vpack.c.b16 %v1539, %v1537
  %v1754 = vpack.c.b16 %v1542, %v1540
  %v1755 = vpack.c.b16 %v1543, %v1541
  %v1756 = vpack.c.b16 %v1546, %v1544
  %v1757 = vpack.c.b16 %v1547, %v1545
  %v1758 = vpack.c.b16 %v1550, %v1548
  %v1759 = vpack.c.b16 %v1551, %v1549
  %v1760 = vpack.c.b16 %v1554, %v1552
  %v1761 = vpack.c.b16 %v1555, %v1553
  %v1762 = vpack.c.b16 %v1558, %v1556
  %v1763 = vpack.c.b16 %v1559, %v1557
  %v1764 = vpack.c.b16 %v1562, %v1560
  %v1765 = vpack.c.b16 %v1563, %v1561
  %v1766 = vpack.c.b16 %v1566, %v1564
  %v1767 = vpack.c.b16 %v1567, %v1565
  %v1768 = vpack.c.b16 %v1570, %v1568
  %v1769 = vpack.c.b16 %v1571, %v1569
  %v1770 = vpack.c.b16 %v1574, %v1572
  %v1771 = vpack.c.b16 %v1575, %v1573
  %v1772 = vpack.c.b16 %v1578, %v1576
  %v1773 = vpack.c.b16 %v1579, %v1577
  %v1774 = vpack.c.b16 %v1582, %v1580
  %v1775 = vpack.c.b16 %v1583, %v1581
  %v1776 = vpack.c.b16 %v1586, %v1584
  %v1777 = vpack.c.b16 %v1587, %v1585
  %v1778 = vpack.c.b16 %v1590, %v1588
  %v1779 = vpack.c.b16 %v1591, %v1589
  %v1780 = vpack.c.b16 %v1594, %v1592
  %v1781 = vpack.c.b16 %v1595, %v1593
  %v1782 = vpack.c.b16 %v1598, %v1596
  %v1783 = vpack.c.b16 %v1599, %v1597
  %v1784 = vpack.c.b16 %v1602, %v1600
  %v1785 = vpack.c.b16 %v1603, %v1601
  %v1786 = vpack.c.b16 %v1606, %v1604
  %v1787 = vpack.c.b16 %v1607, %v1605
  %v1788 = vpack.c.b16 %v1610, %v1608
  %v1789 = vpack.c.b16 %v1611, %v1609
  %v1790 = vpack.c.b16 %v1614, %v1612
  %v1791 = vpack.c.b16 %v1615, %v1613
  %v1792 = vpack.c.b16 %v1618, %v1616
  %v1793 = vpack.c.b16 %v1619, %v1617
  %v1794 = vpack.c.b16 %v1622, %v1620
  %v1795 = vpack.c.b16 %v1623, %v1621
  %v1796 = vpack.c.b16 %v1626, %v1624
  %v1797 = vpack.c.b16 %v1627, %v1625
  %v1798 = vpack.c.b16 %v1630, %v1628
  %v1799 = vpack.c.b16 %v1631, %v1629
  %v1800 = vpack.c.b16 %v1634, %v1632
  %v1801 = vpack.c.b16 %v1635, %v1633
  %v1802 = vpack.c.b16 %v1638, %v1636
  %v1803 = vpack.c.b16 %v1639, %v1637
  %v1804 = vpack.c.b16 %v1642, %v1640
  %v1805 = vpack.c.b16 %v1643, %v1641
  %v1806 = vpack.c.b16 %v1646, %v1644
  %v1807 = vpack.c.b16 %v1647, %v1645
  %v1808 = vpack.c.b16 %v1650, %v1648
  %v1809 = vpack.c.b16 %v1651, %v1649
  %v1810 = vpack.c.b16 %v1654, %v1652
  %v1811 = vpack.c.b16 %v1655, %v1653
  %v1812 = vpack.c.b16 %v1658, %v1656
  %v1813 = vpack.c.b16 %v1659, %v1657
  %v1814 = vpack.c.b16 %v1662, %v1660
  %v1815 = vpack.c.b16 %v1663, %v1661
  %v1816 = vpack.c.b16 %v1666, %v1664
  %v1817 = vpack.c.b16 %v1667, %v1665
  %v1969 = vsel %vm203, %v1037, 0
  %v1972 = vsel %vm203, %v1047, 0
  %v1975 = vsel %vm203, %v1057, 0
  %v1978 = vsel %vm203, %v1067, 0
  %1980 = vmatprep.subr.bf16.mxu0 %v1669
  %1981 = vmatpush1.bf16.msra.mxu0 %v1668
  %1982 = vmatprep.subr.bf16.mxu0 %v1671
  %1983 = vmatpush1.bf16.msra.mxu0 %v1670
  %1984 = vmatprep.subr.bf16.mxu0 %v1673
  %1985 = vmatpush1.bf16.msra.mxu0 %v1672
  %1986 = vmatprep.subr.bf16.mxu0 %v1675
  %1987 = vmatpush1.bf16.msra.mxu0 %v1674
  %1988 = vmatprep.subr.bf16.mxu0 %v1677
  %1989 = vmatpush1.bf16.msra.mxu0 %v1676
  %1990 = vmatprep.subr.bf16.mxu0 %v1679
  %1991 = vmatpush1.bf16.msra.mxu0 %v1678
  %1992 = vmatprep.subr.bf16.mxu0 %v1681
  %1993 = vmatpush1.bf16.msra.mxu0 %v1680
  %1994 = vmatprep.subr.bf16.mxu0 %v1683
  %1995 = vmatpush1.bf16.msra.mxu0 %v1682
  %1996 = vmatprep.subr.bf16.mxu0 %v1685
  %1997 = vmatpush1.bf16.msra.mxu0 %v1684
  %1998 = vmatprep.subr.bf16.mxu0 %v1687
  %1999 = vmatpush1.bf16.msra.mxu0 %v1686
  %2000 = vmatprep.subr.bf16.mxu0 %v1689
  %2001 = vmatpush1.bf16.msra.mxu0 %v1688
  %2002 = vmatprep.subr.bf16.mxu0 %v1691
  %2003 = vmatpush1.bf16.msra.mxu0 %v1690
  %2004 = vmatprep.subr.bf16.mxu0 %v1693
  %2005 = vmatpush1.bf16.msra.mxu0 %v1692
  %2006 = vmatprep.subr.bf16.mxu0 %v1695
  %2007 = vmatpush1.bf16.msra.mxu0 %v1694
  %2008 = vmatprep.subr.bf16.mxu0 %v1697
  %2009 = vmatpush1.bf16.msra.mxu0 %v1696
  %2010 = vmatprep.subr.bf16.mxu0 %v1699
  %2011 = vmatpush1.bf16.msra.mxu0 %v1698
  %2012 = vmatprep.mubr.bf16.mxu0 %v1029
  %2013 = vmatmul.mubr.bf16.gmra.mrb[0].mxu0 %v1028
  %v2014 = vpop.f32.mrb[0].mxu0
  %v2015 = vadd.f32 0.0, %v2014
  %v2016 = vpop.f32.mrb[0].mxu0
  %v2017 = vadd.f32 0.0, %v2016
  %v2018 = vpop.f32.mrb[0].mxu0
  %v2019 = vadd.f32 0.0, %v2018
  %v2020 = vpop.f32.mrb[0].mxu0
  %v2021 = vadd.f32 0.0, %v2020
  %2022 = vmatprep.mubr.bf16.mxu0 %v1039
  %2023 = vmatmul.mubr.bf16.gmra.mrb[0].mxu0 %v1038
  %v2024 = vpop.f32.mrb[0].mxu0
  %v2025 = vadd.f32 0.0, %v2024
  %v2026 = vpop.f32.mrb[0].mxu0
  %v2027 = vadd.f32 0.0, %v2026
  %v2028 = vpop.f32.mrb[0].mxu0
  %v2029 = vadd.f32 0.0, %v2028
  %v2030 = vpop.f32.mrb[0].mxu0
  %v2031 = vadd.f32 0.0, %v2030
  %2032 = vmatprep.mubr.bf16.mxu0 %v1049
  %2033 = vmatmul.mubr.bf16.gmra.mrb[0].mxu0 %v1048
  %v2034 = vpop.f32.mrb[0].mxu0
  %v2035 = vadd.f32 0.0, %v2034
  %v2036 = vpop.f32.mrb[0].mxu0
  %v2037 = vadd.f32 0.0, %v2036
  %v2038 = vpop.f32.mrb[0].mxu0
  %v2039 = vadd.f32 0.0, %v2038
  %v2040 = vpop.f32.mrb[0].mxu0
  %v2041 = vadd.f32 0.0, %v2040
  %2042 = vmatprep.mubr.bf16.mxu0 %v1059
  %2043 = vmatmul.mubr.bf16.gmra.mrb[0].mxu0 %v1058
  %v2044 = vpop.f32.mrb[0].mxu0
  %v2045 = vadd.f32 0.0, %v2044
  %v2046 = vpop.f32.mrb[0].mxu0
  %v2047 = vadd.f32 0.0, %v2046
  %v2048 = vpop.f32.mrb[0].mxu0
  %v2049 = vpop.f32.mrb[0].mxu0
  %2050 = vdwg.mxu0
  %2051 = vmatprep.subr.bf16.mxu0 %v1701
  %2052 = vmatpush1.bf16.msra.mxu0 %v1700
  %2053 = vmatprep.subr.bf16.mxu0 %v1703
  %2054 = vmatpush1.bf16.msra.mxu0 %v1702
  %2055 = vmatprep.subr.bf16.mxu0 %v1705
  %2056 = vmatpush1.bf16.msra.mxu0 %v1704
  %2057 = vmatprep.subr.bf16.mxu0 %v1707
  %2058 = vmatpush1.bf16.msra.mxu0 %v1706
  %2059 = vmatprep.subr.bf16.mxu0 %v1709
  %2060 = vmatpush1.bf16.msra.mxu0 %v1708
  %2061 = vmatprep.subr.bf16.mxu0 %v1711
  %2062 = vmatpush1.bf16.msra.mxu0 %v1710
  %2063 = vmatprep.subr.bf16.mxu0 %v1713
  %2064 = vmatpush1.bf16.msra.mxu0 %v1712
  %2065 = vmatprep.subr.bf16.mxu0 %v1715
  %2066 = vmatpush1.bf16.msra.mxu0 %v1714
  %2067 = vmatprep.subr.bf16.mxu0 %v1717
  %2068 = vmatpush1.bf16.msra.mxu0 %v1716
  %2069 = vmatprep.subr.bf16.mxu0 %v1719
  %2070 = vmatpush1.bf16.msra.mxu0 %v1718
  %2071 = vmatprep.subr.bf16.mxu0 %v1721
  %2072 = vmatpush1.bf16.msra.mxu0 %v1720
  %2073 = vmatprep.subr.bf16.mxu0 %v1723
  %2074 = vmatpush1.bf16.msra.mxu0 %v1722
  %2075 = vmatprep.subr.bf16.mxu0 %v1725
  %2076 = vmatpush1.bf16.msra.mxu0 %v1724
  %2077 = vmatprep.subr.bf16.mxu0 %v1727
  %2078 = vmatpush1.bf16.msra.mxu0 %v1726
  %2079 = vmatprep.subr.bf16.mxu0 %v1729
  %2080 = vmatpush1.bf16.msra.mxu0 %v1728
  %2081 = vmatprep.subr.bf16.mxu0 %v1731
  %2082 = vmatpush1.bf16.msra.mxu0 %v1730
  %2083 = vmatprep.mubr.bf16.mxu0 %v1031
  %2084 = vmatmul.mubr.bf16.gmra.mrb[0].mxu0 %v1030
  %v2085 = vpop.f32.mrb[0].mxu0
  %v2086 = vadd.f32 %v2015, %v2085
  %v2087 = vpop.f32.mrb[0].mxu0
  %v2088 = vadd.f32 %v2017, %v2087
  %v2089 = vpop.f32.mrb[0].mxu0
  %v2090 = vadd.f32 %v2019, %v2089
  %v2091 = vpop.f32.mrb[0].mxu0
  %v2092 = vadd.f32 %v2021, %v2091
  %2093 = vmatprep.mubr.bf16.mxu0 %v1041
  %2094 = vmatmul.mubr.bf16.gmra.mrb[0].mxu0 %v1040
  %v2095 = vpop.f32.mrb[0].mxu0
  %v2096 = vadd.f32 %v2025, %v2095
  %v2097 = vpop.f32.mrb[0].mxu0
  %v2098 = vadd.f32 %v2027, %v2097
  %v2099 = vpop.f32.mrb[0].mxu0
  %v2100 = vadd.f32 %v2029, %v2099
  %v2101 = vpop.f32.mrb[0].mxu0
  %v2102 = vadd.f32 %v2031, %v2101
  %2103 = vmatprep.mubr.bf16.mxu0 %v1051
  %2104 = vmatmul.mubr.bf16.gmra.mrb[0].mxu0 %v1050
  %v2105 = vpop.f32.mrb[0].mxu0
  %v2106 = vadd.f32 %v2035, %v2105
  %v2107 = vpop.f32.mrb[0].mxu0
  %v2108 = vadd.f32 %v2037, %v2107
  %v2109 = vpop.f32.mrb[0].mxu0
  %v2110 = vadd.f32 %v2039, %v2109
  %v2111 = vpop.f32.mrb[0].mxu0
  %v2112 = vadd.f32 %v2041, %v2111
  %2113 = vmatprep.mubr.bf16.mxu0 %v1061
  %2114 = vmatmul.mubr.bf16.gmra.mrb[0].mxu0 %v1060
  %v2115 = vpop.f32.mrb[0].mxu0
  %v2116 = vadd.f32 %v2045, %v2115
  %v2117 = vpop.f32.mrb[0].mxu0
  %v2118 = vadd.f32 %v2047, %v2117
  %v2119 = vpop.f32.mrb[0].mxu0
  %v2120 = vpop.f32.mrb[0].mxu0
  %2121 = vdwg.mxu0
  %2122 = vmatprep.subr.bf16.mxu0 %v1733
  %2123 = vmatpush1.bf16.msra.mxu0 %v1732
  %2124 = vmatprep.subr.bf16.mxu0 %v1735
  %2125 = vmatpush1.bf16.msra.mxu0 %v1734
  %2126 = vmatprep.subr.bf16.mxu0 %v1737
  %2127 = vmatpush1.bf16.msra.mxu0 %v1736
  %2128 = vmatprep.subr.bf16.mxu0 %v1739
  %2129 = vmatpush1.bf16.msra.mxu0 %v1738
  %2130 = vmatprep.subr.bf16.mxu0 %v1741
  %2131 = vmatpush1.bf16.msra.mxu0 %v1740
  %2132 = vmatprep.subr.bf16.mxu0 %v1743
  %2133 = vmatpush1.bf16.msra.mxu0 %v1742
  %2134 = vmatprep.subr.bf16.mxu0 %v1745
  %2135 = vmatpush1.bf16.msra.mxu0 %v1744
  %2136 = vmatprep.subr.bf16.mxu0 %v1747
  %2137 = vmatpush1.bf16.msra.mxu0 %v1746
  %2138 = vmatprep.subr.bf16.mxu0 %v1749
  %2139 = vmatpush1.bf16.msra.mxu0 %v1748
  %2140 = vmatprep.subr.bf16.mxu0 %v1751
  %2141 = vmatpush1.bf16.msra.mxu0 %v1750
  %2142 = vmatprep.subr.bf16.mxu0 %v1753
  %2143 = vmatpush1.bf16.msra.mxu0 %v1752
  %2144 = vmatprep.subr.bf16.mxu0 %v1755
  %2145 = vmatpush1.bf16.msra.mxu0 %v1754
  %2146 = vmatprep.subr.bf16.mxu0 %v1757
  %2147 = vmatpush1.bf16.msra.mxu0 %v1756
  %2148 = vmatprep.subr.bf16.mxu0 %v1759
  %2149 = vmatpush1.bf16.msra.mxu0 %v1758
  %2150 = vmatprep.subr.bf16.mxu0 %v1761
  %2151 = vmatpush1.bf16.msra.mxu0 %v1760
  %2152 = vmatprep.subr.bf16.mxu0 %v1763
  %2153 = vmatpush1.bf16.msra.mxu0 %v1762
  %2154 = vmatprep.mubr.bf16.mxu0 %v1033
  %2155 = vmatmul.mubr.bf16.gmra.mrb[0].mxu0 %v1032
  %v2156 = vpop.f32.mrb[0].mxu0
  %v2157 = vadd.f32 %v2086, %v2156
  %v2158 = vpop.f32.mrb[0].mxu0
  %v2159 = vadd.f32 %v2088, %v2158
  %v2160 = vpop.f32.mrb[0].mxu0
  %v2161 = vadd.f32 %v2090, %v2160
  %v2162 = vpop.f32.mrb[0].mxu0
  %v2163 = vadd.f32 %v2092, %v2162
  %2164 = vmatprep.mubr.bf16.mxu0 %v1043
  %2165 = vmatmul.mubr.bf16.gmra.mrb[0].mxu0 %v1042
  %v2166 = vpop.f32.mrb[0].mxu0
  %v2167 = vadd.f32 %v2096, %v2166
  %v2168 = vpop.f32.mrb[0].mxu0
  %v2169 = vadd.f32 %v2098, %v2168
  %v2170 = vpop.f32.mrb[0].mxu0
  %v2171 = vadd.f32 %v2100, %v2170
  %v2172 = vpop.f32.mrb[0].mxu0
  %v2173 = vadd.f32 %v2102, %v2172
  %2174 = vmatprep.mubr.bf16.mxu0 %v1053
  %2175 = vmatmul.mubr.bf16.gmra.mrb[0].mxu0 %v1052
  %v2176 = vpop.f32.mrb[0].mxu0
  %v2177 = vadd.f32 %v2106, %v2176
  %v2178 = vpop.f32.mrb[0].mxu0
  %v2179 = vadd.f32 %v2108, %v2178
  %v2180 = vpop.f32.mrb[0].mxu0
  %v2181 = vadd.f32 %v2110, %v2180
  %v2182 = vpop.f32.mrb[0].mxu0
  %v2183 = vadd.f32 %v2112, %v2182
  %2184 = vmatprep.mubr.bf16.mxu0 %v1063
  %2185 = vmatmul.mubr.bf16.gmra.mrb[0].mxu0 %v1062
  %v2186 = vpop.f32.mrb[0].mxu0
  %v2187 = vadd.f32 %v2116, %v2186
  %v2188 = vpop.f32.mrb[0].mxu0
  %v2189 = vadd.f32 %v2118, %v2188
  %v2190 = vpop.f32.mrb[0].mxu0
  %v2191 = vpop.f32.mrb[0].mxu0
  %2192 = vdwg.mxu0
  %2193 = vmatprep.subr.bf16.mxu0 %v1765
  %2194 = vmatpush1.bf16.msra.mxu0 %v1764
  %2195 = vmatprep.subr.bf16.mxu0 %v1767
  %2196 = vmatpush1.bf16.msra.mxu0 %v1766
  %2197 = vmatprep.subr.bf16.mxu0 %v1769
  %2198 = vmatpush1.bf16.msra.mxu0 %v1768
  %2199 = vmatprep.subr.bf16.mxu0 %v1771
  %2200 = vmatpush1.bf16.msra.mxu0 %v1770
  %2201 = vmatprep.subr.bf16.mxu0 %v1773
  %2202 = vmatpush1.bf16.msra.mxu0 %v1772
  %2203 = vmatprep.subr.bf16.mxu0 %v1775
  %2204 = vmatpush1.bf16.msra.mxu0 %v1774
  %2205 = vmatprep.subr.bf16.mxu0 %v1777
  %2206 = vmatpush1.bf16.msra.mxu0 %v1776
  %2207 = vmatprep.subr.bf16.mxu0 %v1779
  %2208 = vmatpush1.bf16.msra.mxu0 %v1778
  %2209 = vmatprep.subr.bf16.mxu0 %v1781
  %2210 = vmatpush1.bf16.msra.mxu0 %v1780
  %2211 = vmatprep.subr.bf16.mxu0 %v1783
  %2212 = vmatpush1.bf16.msra.mxu0 %v1782
  %2213 = vmatprep.subr.bf16.mxu0 %v1785
  %2214 = vmatpush1.bf16.msra.mxu0 %v1784
  %2215 = vmatprep.subr.bf16.mxu0 %v1787
  %2216 = vmatpush1.bf16.msra.mxu0 %v1786
  %2217 = vmatprep.subr.bf16.mxu0 %v1789
  %2218 = vmatpush1.bf16.msra.mxu0 %v1788
  %2219 = vmatprep.subr.bf16.mxu0 %v1791
  %2220 = vmatpush1.bf16.msra.mxu0 %v1790
  %2221 = vmatprep.subr.bf16.mxu0 %v1793
  %2222 = vmatpush1.bf16.msra.mxu0 %v1792
  %2223 = vmatprep.subr.bf16.mxu0 %v1795
  %2224 = vmatpush1.bf16.msra.mxu0 %v1794
  %2225 = vmatprep.mubr.bf16.mxu0 %v1035
  %2226 = vmatmul.mubr.bf16.gmra.mrb[0].mxu0 %v1034
  %v2227 = vpop.f32.mrb[0].mxu0
  %v2228 = vadd.f32 %v2157, %v2227
  %v2229 = vpop.f32.mrb[0].mxu0
  %v2230 = vadd.f32 %v2159, %v2229
  %v2231 = vpop.f32.mrb[0].mxu0
  %v2232 = vadd.f32 %v2161, %v2231
  %v2233 = vpop.f32.mrb[0].mxu0
  %v2234 = vadd.f32 %v2163, %v2233
  %2235 = vmatprep.mubr.bf16.mxu0 %v1045
  %2236 = vmatmul.mubr.bf16.gmra.mrb[0].mxu0 %v1044
  %v2237 = vpop.f32.mrb[0].mxu0
  %v2238 = vadd.f32 %v2167, %v2237
  %v2239 = vpop.f32.mrb[0].mxu0
  %v2240 = vadd.f32 %v2169, %v2239
  %v2241 = vpop.f32.mrb[0].mxu0
  %v2242 = vadd.f32 %v2171, %v2241
  %v2243 = vpop.f32.mrb[0].mxu0
  %v2244 = vadd.f32 %v2173, %v2243
  %2245 = vmatprep.mubr.bf16.mxu0 %v1055
  %2246 = vmatmul.mubr.bf16.gmra.mrb[0].mxu0 %v1054
  %v2247 = vpop.f32.mrb[0].mxu0
  %v2248 = vadd.f32 %v2177, %v2247
  %v2249 = vpop.f32.mrb[0].mxu0
  %v2250 = vadd.f32 %v2179, %v2249
  %v2251 = vpop.f32.mrb[0].mxu0
  %v2252 = vadd.f32 %v2181, %v2251
  %v2253 = vpop.f32.mrb[0].mxu0
  %v2254 = vadd.f32 %v2183, %v2253
  %2255 = vmatprep.mubr.bf16.mxu0 %v1065
  %2256 = vmatmul.mubr.bf16.gmra.mrb[0].mxu0 %v1064
  %v2257 = vpop.f32.mrb[0].mxu0
  %v2258 = vadd.f32 %v2187, %v2257
  %v2259 = vpop.f32.mrb[0].mxu0
  %v2260 = vadd.f32 %v2189, %v2259
  %v2261 = vpop.f32.mrb[0].mxu0
  %v2262 = vpop.f32.mrb[0].mxu0
  %2263 = vdwg.mxu0
  %2264 = vmatprep.subr.bf16.mxu0 %v1797
  %2265 = vmatpush1.bf16.msra.mxu0 %v1796
  %2266 = vmatprep.subr.bf16.mxu0 %v1799
  %2267 = vmatpush1.bf16.msra.mxu0 %v1798
  %2268 = vmatprep.subr.bf16.mxu0 %v1801
  %2269 = vmatpush1.bf16.msra.mxu0 %v1800
  %2270 = vmatprep.subr.bf16.mxu0 %v1803
  %2271 = vmatpush1.bf16.msra.mxu0 %v1802
  %2272 = vmatprep.subr.bf16.mxu0 %v1805
  %2273 = vmatpush1.bf16.msra.mxu0 %v1804
  %2274 = vmatprep.subr.bf16.mxu0 %v1807
  %2275 = vmatpush1.bf16.msra.mxu0 %v1806
  %2276 = vmatprep.subr.bf16.mxu0 %v1809
  %2277 = vmatpush1.bf16.msra.mxu0 %v1808
  %2278 = vmatprep.subr.bf16.mxu0 %v1811
  %2279 = vmatpush1.bf16.msra.mxu0 %v1810
  %2280 = vmatprep.subr.bf16.mxu0 %v1813
  %2281 = vmatpush1.bf16.msra.mxu0 %v1812
  %2282 = vmatprep.subr.bf16.mxu0 %v1815
  %2283 = vmatpush1.bf16.msra.mxu0 %v1814
  %2284 = vmatprep.subr.bf16.mxu0 %v1817
  %2285 = vmatpush1.bf16.msra.mxu0 %v1816
  %2286 = vmatprep.subr.bf16.mxu0 0
  %2287 = vmatpush1.bf16.msra.mxu0 0
  %2288 = vmatprep.subr.bf16.mxu0 0
  %2289 = vmatpush1.bf16.msra.mxu0 0
  %2290 = vmatprep.subr.bf16.mxu0 0
  %2291 = vmatpush1.bf16.msra.mxu0 0
  %2292 = vmatprep.subr.bf16.mxu0 0
  %2293 = vmatpush1.bf16.msra.mxu0 0
  %2294 = vmatprep.subr.bf16.mxu0 0
  %2295 = vmatpush1.bf16.msra.mxu0 0
  %2296 = vmatprep.mubr.bf16.mxu0 %v1969
  %2297 = vmatmul.mubr.bf16.gmra.mrb[0].mxu0 %v1036
  %v2298 = vpop.f32.mrb[0].mxu0
  %v2299 = vadd.f32 %v2228, %v2298
  %v2300 = vpop.f32.mrb[0].mxu0
  %v2301 = vadd.f32 %v2230, %v2300
  %v2302 = vpop.f32.mrb[0].mxu0
  %v2303 = vadd.f32 %v2232, %v2302
  %v2304 = vpop.f32.mrb[0].mxu0
  %v2305 = vadd.f32 %v2234, %v2304
  %2306 = vmatprep.mubr.bf16.mxu0 %v1972
  %2307 = vmatmul.mubr.bf16.gmra.mrb[0].mxu0 %v1046
  %v2308 = vpop.f32.mrb[0].mxu0
  %v2309 = vadd.f32 %v2238, %v2308
  %v2310 = vpop.f32.mrb[0].mxu0
  %v2311 = vadd.f32 %v2240, %v2310
  %v2312 = vpop.f32.mrb[0].mxu0
  %v2313 = vadd.f32 %v2242, %v2312
  %v2314 = vpop.f32.mrb[0].mxu0
  %v2315 = vadd.f32 %v2244, %v2314
  %2316 = vmatprep.mubr.bf16.mxu0 %v1975
  %2317 = vmatmul.mubr.bf16.gmra.mrb[0].mxu0 %v1056
  %v2318 = vpop.f32.mrb[0].mxu0
  %v2319 = vadd.f32 %v2248, %v2318
  %v2320 = vpop.f32.mrb[0].mxu0
  %v2321 = vadd.f32 %v2250, %v2320
  %v2322 = vpop.f32.mrb[0].mxu0
  %v2323 = vadd.f32 %v2252, %v2322
  %v2324 = vpop.f32.mrb[0].mxu0
  %v2325 = vadd.f32 %v2254, %v2324
  %2326 = vmatprep.mubr.bf16.mxu0 %v1978
  %2327 = vmatmul.mubr.bf16.gmra.mrb[0].mxu0 %v1066
  %v2328 = vpop.f32.mrb[0].mxu0
  %v2329 = vadd.f32 %v2258, %v2328
  %v2330 = vpop.f32.mrb[0].mxu0
  %v2331 = vadd.f32 %v2260, %v2330
  %v2332 = vpop.f32.mrb[0].mxu0
  %v2333 = vpop.f32.mrb[0].mxu0
  %2334 = vdwg.mxu0
  %2335 = vst [vmem:[%s3] sm:$0xff] %v2299
  %vm2336 = vcmask 523264
  %2337 = vst.msk [vmem:[%s3 + $0x8] sm:$0xff] %vm2336, %v2301
  %2338 = vst [vmem:[%s3 + $0x10] sm:$0xff] %v2303
  %2339 = vst.msk [vmem:[%s3 + $0x18] sm:$0xff] %vm2336, %v2305
  %2340 = vst [vmem:[%s3 + $0x20] sm:$0xff] %v2309
  %2341 = vst.msk [vmem:[%s3 + $0x28] sm:$0xff] %vm2336, %v2311
  %2342 = vst [vmem:[%s3 + $0x30] sm:$0xff] %v2313
  %2343 = vst.msk [vmem:[%s3 + $0x38] sm:$0xff] %vm2336, %v2315
  %2344 = vst [vmem:[%s3 + $0x40] sm:$0xff] %v2319
  %2345 = vst.msk [vmem:[%s3 + $0x48] sm:$0xff] %vm2336, %v2321
  %2346 = vst [vmem:[%s3 + $0x50] sm:$0xff] %v2323
  %2347 = vst.msk [vmem:[%s3 + $0x58] sm:$0xff] %vm2336, %v2325
  %2348 = vst [vmem:[%s3 + $0x60] sm:$0x1] %v2329
  %vm2349 = vcmask 516096
  %2350 = vst.msk [vmem:[%s3 + $0x68] sm:$0x1] %vm2349, %v2331
  // Predicated region
  $region14: #{bn_relu_conv1x1.1} parent=0 // pred_check
    _
  $region15: #{bn_relu_conv1x1.1} parent=0 // pred_check_branch
    %2352 = sbr.rel (0) target = $region17
  $region16: #{bn_relu_conv1x1.1} parent=0 // pred_region
    _
  $region17: #{bn_relu_conv1x1.1} parent=0 // pred_fallthru
    _
  // Predicated region
  $region18: #{bn_relu_conv1x1.1} parent=0 // pred_check
    _
  $region19: #{bn_relu_conv1x1.1} parent=0 // pred_check_branch
    %2354 = sbr.rel (0) target = $region21
  $region20: #{bn_relu_conv1x1.1} parent=0 // pred_region
    _
  $region21: #{bn_relu_conv1x1.1} parent=0 // pred_fallthru
    _

</llo_original>
